<compile_context>
chip_gen: v6e
topology: v6e:2x2x1
jax: 0.10.0
libtpu: 0.0.40
codegen_flags: <defaults>
</compile_context>

<pallas_src>
import functools

import jax
import jax.numpy as jnp
from jax.experimental import pallas as pl
from jax.experimental.pallas import tpu as pltpu

LN_EPS = 1e-5  # torch.nn.LayerNorm default eps

# Rows of the packed vector slab (each row is a zero-padded, lane-dense vector).
_B1, _G1, _BE1 = 0, 1, 2
_B2, _G2, _BE2 = 3, 4, 5
_B3, _G3, _BE3 = 6, 7, 8
_BMU = 9
_VEC_ROWS = 16  # padded to a multiple of 8 sublanes


def _round_up(x, m):
    return (x + m - 1) // m * m


def _hidden_align():
    """256-aligned padding feeds v6e/v7x's 256-wide MXU; 128 is native on <=v5."""
    try:
        kind = jax.devices()[0].device_kind.lower()
    except Exception:
        return 256
    return 128 if any(t in kind for t in ("v2", "v3", "v4", "v5")) else 256


# ----------------------------------------------------------------------------- kernel
def actor_kernel(d1, d2, d3,            # true (unpadded) LayerNorm widths, python ints
                 ar_ref,                # (1, 1) f32 SMEM: action_range
                 x_ref,                 # (tile_b, d_in_p) bf16 state tile
                 w1_ref, w2_ref, w3_ref, wmu_ref,   # bf16 weights, per-layer padded
                 v_ref,                 # (16, v_pad) f32 packed bias/gamma/beta
                 out_ref):              # (tile_b, n_act_p) f32
    action_range = ar_ref[0, 0]

    def layer(h, w_ref, b_row, g_row, be_row, width, relu):
        d_out_p = w_ref.shape[1]
        # bf16 MXU matmul, f32 accumulation.
        acc = jnp.dot(h, w_ref[...], preferred_element_type=jnp.float32)
        acc = acc + v_ref[b_row:b_row + 1, :d_out_p]
        # Single-pass LayerNorm statistics over the true feature width.  Padded
        # lanes of `acc` are exactly 0 (zero-padded weight columns, biases and
        # input lanes), so full-width sums equal masked sums.
        inv_w = 1.0 / width
        mean = jnp.sum(acc, axis=-1, keepdims=True) * inv_w
        ex2 = jnp.sum(acc * acc, axis=-1, keepdims=True) * inv_w
        var = ex2 - mean * mean
        out = (acc - mean) * jax.lax.rsqrt(var + LN_EPS)
        # gamma/beta are zero in padded lanes -> padded lanes return to exactly 0.
        out = (out * v_ref[g_row:g_row + 1, :d_out_p]
               + v_ref[be_row:be_row + 1, :d_out_p])
        if relu:
            out = jnp.maximum(out, 0.0)
        return out.astype(jnp.bfloat16)

    h = layer(x_ref[...], w1_ref, _B1, _G1, _BE1, d1, relu=True)
    h = layer(h,          w2_ref, _B2, _G2, _BE2, d2, relu=True)
    h = layer(h,          w3_ref, _B3, _G3, _BE3, d3, relu=False)  # no relu after bn3

    n_act_p = wmu_ref.shape[1]
    mu = jnp.dot(h, wmu_ref[...], preferred_element_type=jnp.float32)
    mu = mu + v_ref[_BMU:_BMU + 1, :n_act_p]
    # TODO(synk): emit bf16 actions instead of f32 if the consumer tolerates it.
    out_ref[...] = jnp.tanh(mu) * action_range


# ----------------------------------------------------------------------------- packing
def pack_params(p, *, hidden_align=None):
    """Pack logical (unpadded, f32) params into lane-dense, per-layer-padded slabs.

    Correctness of the in-kernel masked LayerNorm relies on every padded weight
    column / bias / gamma / beta / input lane being exactly zero-filled here.
    """
    d_in, d1 = p["w1"].shape
    d2 = p["w2"].shape[1]
    d3 = p["w3"].shape[1]
    n_act = p["wmu"].shape[1]

    align = _hidden_align() if hidden_align is None else hidden_align

    def pad_dim(d):
        return _round_up(d, 128) if d <= 128 else _round_up(d, align)

    d_in_p, d1_p, d2_p, d3_p, n_act_p = (pad_dim(d) for d in (d_in, d1, d2, d3, n_act))

    def pad_w(w, rp, cp):
        out = jnp.zeros((rp, cp), jnp.float32).at[:w.shape[0], :w.shape[1]].set(w)
        return out.astype(jnp.bfloat16)

    v_pad = max(d1_p, d2_p, d3_p, n_act_p)

    def pad_v(v):
        return jnp.zeros((v_pad,), jnp.float32).at[:v.shape[-1]].set(v.reshape(-1))

    rows = [p["b1"], p["g1"], p["be1"],
            p["b2"], p["g2"], p["be2"],
            p["b3"], p["g3"], p["be3"],
            p["bmu"]]
    v_rows = [pad_v(r) for r in rows]
    v_rows += [jnp.zeros((v_pad,), jnp.float32)] * (_VEC_ROWS - len(v_rows))

    return {
        "w1": pad_w(p["w1"], d_in_p, d1_p),
        "w2": pad_w(p["w2"], d1_p, d2_p),
        "w3": pad_w(p["w3"], d2_p, d3_p),
        "wmu": pad_w(p["wmu"], d3_p, n_act_p),
        "v": jnp.stack(v_rows),
        "dims": (d_in, d1, d2, d3, n_act),
        "pdims": (d_in_p, d1_p, d2_p, d3_p, n_act_p),
    }


# ----------------------------------------------------------------------------- wrapper
def actor_forward_pallas(state, packed, action_range, *, tile_b=256):
    """state: [B, D_in] f32. Returns [B, n_actions] f32."""
    B, d_in = state.shape
    d_in_t, d1, d2, d3, n_act = packed["dims"]
    d_in_p, d1_p, d2_p, d3_p, n_act_p = packed["pdims"]
    assert d_in == d_in_t
    v_rows, v_pad = packed["v"].shape

    # Batch tiling: multiple of 16 rows (full bf16 vregs on the matmul LHS) and at
    # least 2 grid steps whenever B > 16 so v7x's second TensorCore gets a shard.
    cap = _round_up(max(16, (B + 1) // 2), 16)
    tile_b = min(_round_up(max(tile_b, 16), 16), cap)
    b_pad = _round_up(B, tile_b)
    n_tiles = b_pad // tile_b

    # bf16 state tile: halves the input HBM->VMEM traffic (MXU input is bf16 anyway).
    x_pad = jnp.zeros((b_pad, d_in_p), jnp.bfloat16)
    x_pad = x_pad.at[:B, :d_in].set(state.astype(jnp.bfloat16))
    ar = jnp.full((1, 1), action_range, jnp.float32)

    # Explicit scoped-VMEM budget sized from the actual slabs (generous 2x margin),
    # capped well under v7x's 64 MiB total VMEM.
    w_bytes = 2 * (d_in_p * d1_p + d1_p * d2_p + d2_p * d3_p + d3_p * n_act_p)
    v_bytes = 4 * v_rows * v_pad
    io_bytes = 2 * tile_b * d_in_p * 2 + 2 * tile_b * n_act_p * 4
    needed = 2 * (w_bytes + v_bytes) + io_bytes
    vmem_limit = int(min(48 * 2 ** 20, max(8 * 2 ** 20, 2 * needed)))

    kernel = functools.partial(actor_kernel, d1, d2, d3)

    def run(single_buffer_params):
        # Constant-index_map params don't need a second pipeline buffer.
        pm = {"pipeline_mode": pl.Buffered(1)} if single_buffer_params else {}
        in_specs = [
            pl.BlockSpec(memory_space=pltpu.MemorySpace.SMEM),        # action_range
            pl.BlockSpec((tile_b, d_in_p), lambda i: (i, 0)),         # state tile
            pl.BlockSpec((d_in_p, d1_p), lambda i: (0, 0), **pm),     # w1 (resident)
            pl.BlockSpec((d1_p, d2_p), lambda i: (0, 0), **pm),       # w2 (resident)
            pl.BlockSpec((d2_p, d3_p), lambda i: (0, 0), **pm),       # w3 (resident)
            pl.BlockSpec((d3_p, n_act_p), lambda i: (0, 0), **pm),    # wmu (resident)
            pl.BlockSpec((v_rows, v_pad), lambda i: (0, 0), **pm),    # bias/gamma/beta
        ]
        return pl.pallas_call(
            kernel,
            grid=(n_tiles,),
            in_specs=in_specs,
            out_specs=pl.BlockSpec((tile_b, n_act_p), lambda i: (i, 0)),
            out_shape=jax.ShapeDtypeStruct((b_pad, n_act_p), jnp.float32),
            compiler_params=pltpu.CompilerParams(
                dimension_semantics=("parallel",),
                vmem_limit_bytes=vmem_limit),
        )(ar, x_pad, packed["w1"], packed["w2"], packed["w3"], packed["wmu"],
          packed["v"])

    try:
        out_pad = run(True)          # single-buffered resident params
    except Exception:                # fallback if pipeline_mode is unsupported
        out_pad = run(False)

    return out_pad[:B, :n_act]


# ----------------------------------------------------------------------------- params / reference
def init_params(key, input_dim, fc1_dims, fc2_dims, fc3_dims, n_actions):
    """Deterministic init mirroring the module's uniform init scheme.

    PyTorch stores Linear weights as [out, in]; we store [in, out] so the kernel
    can do x @ W directly.
    """
    ks = jax.random.split(key, 8)

    def uni(k, shape, bound):
        return jax.random.uniform(k, shape, jnp.float32, -bound, bound)

    f1 = 1.0 / float(jnp.sqrt(jnp.float32(fc1_dims)))
    f2 = 1.0 / float(jnp.sqrt(jnp.float32(fc2_dims)))
    f3 = 1.0 / float(jnp.sqrt(jnp.float32(fc3_dims)))
    f4 = 0.003

    return {
        "w1": uni(ks[0], (input_dim, fc1_dims), f1),
        "b1": uni(ks[1], (fc1_dims,), f1),
        "g1": jnp.ones((fc1_dims,), jnp.float32),
        "be1": jnp.zeros((fc1_dims,), jnp.float32),
        "w2": uni(ks[2], (fc1_dims, fc2_dims), f2),
        "b2": uni(ks[3], (fc2_dims,), f2),
        "g2": jnp.ones((fc2_dims,), jnp.float32),
        "be2": jnp.zeros((fc2_dims,), jnp.float32),
        "w3": uni(ks[4], (fc2_dims, fc3_dims), f3),
        "b3": uni(ks[5], (fc3_dims,), f3),
        "g3": jnp.ones((fc3_dims,), jnp.float32),
        "be3": jnp.zeros((fc3_dims,), jnp.float32),
        "wmu": uni(ks[6], (fc3_dims, n_actions), f4),
        "bmu": uni(ks[7], (n_actions,), f4),
    }


def actor_forward_ref(state, p, action_range):
    """Pure-JAX reference mirroring the kernel's precision (bf16 matmul inputs,
    f32 accumulation, f32 LayerNorm)."""
    def dot16(a, w):
        return jnp.dot(a.astype(jnp.bfloat16), w.astype(jnp.bfloat16),
                       preferred_element_type=jnp.float32)

    def ln(h, g, b):
        m = jnp.mean(h, axis=-1, keepdims=True)
        v = jnp.mean((h - m) ** 2, axis=-1, keepdims=True)
        return (h - m) * jax.lax.rsqrt(v + LN_EPS) * g + b

    h = jnp.maximum(ln(dot16(state, p["w1"]) + p["b1"], p["g1"], p["be1"]), 0.0)
    h = jnp.maximum(ln(dot16(h, p["w2"]) + p["b2"], p["g2"], p["be2"]), 0.0)
    h = ln(dot16(h, p["w3"]) + p["b3"], p["g3"], p["be3"])
    return jnp.tanh(dot16(h, p["wmu"]) + p["bmu"]) * action_range


# ----------------------------------------------------------------------------- demo
if __name__ == "__main__":
    key = jax.random.PRNGKey(0)
    k_state, k_params = jax.random.split(key)

    # Small shapes consistent with the module: state [B, input_dim]
    B, INPUT_DIM = 64, 32
    FC1, FC2, FC3 = 64, 64, 32
    N_ACTIONS = 4
    ACTION_RANGE = 2.0

    state = jax.random.normal(k_state, (B, INPUT_DIM), jnp.float32)
    params = init_params(k_params, INPUT_DIM, FC1, FC2, FC3, N_ACTIONS)
    packed = pack_params(params)

    # Default tile_b is capped to ceil(B/2)=32 -> grid=(2,), exercising both the
    # batched-grid path and the "keep v7x's second core busy" logic.
    out = actor_forward_pallas(state, packed, ACTION_RANGE)
    out = jax.block_until_ready(out)

    ref = actor_forward_ref(state, params, ACTION_RANGE)
    assert out.shape == (B, N_ACTIONS), out.shape
    max_err = jnp.max(jnp.abs(out - ref))
    assert jnp.allclose(out, ref, atol=1e-4, rtol=1e-4), f"max abs err {max_err}"

    print("KERNEL_OK")
</pallas_src>

<mosaic_0001>
module attributes {stable_mosaic.version = 11 : i64} {
  func.func @actor_kernel(%arg0: i32, %arg1: memref<1x1xf32, #tpu.memory_space<smem>>, %arg2: memref<32x128xbf16, #tpu.memory_space<vmem>>, %arg3: memref<128x128xbf16, #tpu.memory_space<vmem>>, %arg4: memref<128x128xbf16, #tpu.memory_space<vmem>>, %arg5: memref<128x128xbf16, #tpu.memory_space<vmem>>, %arg6: memref<128x128xbf16, #tpu.memory_space<vmem>>, %arg7: memref<16x128xf32, #tpu.memory_space<vmem>>, %arg8: memref<32x128xf32, #tpu.memory_space<vmem>>) attributes {dimension_semantics = [#tpu.dimension_semantics<parallel>], iteration_bounds = array<i64: 2>, scalar_prefetch = 0 : i64, scratch_operands = 0 : i64, tpu.core_type = #tpu.core_type<tc>, window_params = [{transform_indices = @transform_0, window_bounds = array<i64: 1, 1>}, {transform_indices = @transform_1, window_bounds = array<i64: 32, 128>}, {pipeline_mode = #tpu.pipeline_mode<synchronous>, transform_indices = @transform_2, window_bounds = array<i64: 128, 128>}, {pipeline_mode = #tpu.pipeline_mode<synchronous>, transform_indices = @transform_3, window_bounds = array<i64: 128, 128>}, {pipeline_mode = #tpu.pipeline_mode<synchronous>, transform_indices = @transform_4, window_bounds = array<i64: 128, 128>}, {pipeline_mode = #tpu.pipeline_mode<synchronous>, transform_indices = @transform_5, window_bounds = array<i64: 128, 128>}, {pipeline_mode = #tpu.pipeline_mode<synchronous>, transform_indices = @transform_6, window_bounds = array<i64: 16, 128>}, {transform_indices = @transform_7, window_bounds = array<i64: 32, 128>}]} {
    %c0 = arith.constant 0 : index
    %c0_0 = arith.constant 0 : index
    %0 = memref.load %arg1[%c0, %c0_0] : memref<1x1xf32, #tpu.memory_space<smem>>
    %c0_1 = arith.constant 0 : index
    %c0_2 = arith.constant 0 : index
    %1 = vector.load %arg2[%c0_1, %c0_2] : memref<32x128xbf16, #tpu.memory_space<vmem>>, vector<32x128xbf16>
    %c0_3 = arith.constant 0 : index
    %c0_4 = arith.constant 0 : index
    %2 = vector.load %arg3[%c0_3, %c0_4] : memref<128x128xbf16, #tpu.memory_space<vmem>>, vector<128x128xbf16>
    %cst = arith.constant dense<0.000000e+00> : vector<32x128xf32>
    %3 = tpu.matmul %1, %2, %cst {dimension_numbers = #tpu.dot_dimension_numbers<[1], [0], [0], [1], [0, 0, 1, 1], [], []>} : vector<32x128xbf16>, vector<128x128xbf16>, vector<32x128xf32> -> vector<32x128xf32>
    %c0_5 = arith.constant 0 : index
    %c0_6 = arith.constant 0 : index
    %4 = vector.load %arg7[%c0_5, %c0_6] : memref<16x128xf32, #tpu.memory_space<vmem>>, vector<1x128xf32>
    %5 = vector.broadcast %4 : vector<1x128xf32> to vector<32x128xf32>
    %6 = arith.addf %3, %5 : vector<32x128xf32>
    %cst_7 = arith.constant dense<0.000000e+00> : vector<32xf32>
    %7 = vector.multi_reduction <add>, %6, %cst_7 [1] : vector<32x128xf32> to vector<32xf32>
    %8 = vector.shape_cast %7 : vector<32xf32> to vector<32x1xf32>
    %cst_8 = arith.constant 1.562500e-02 : f32
    %9 = vector.broadcast %cst_8 : f32 to vector<32x1xf32>
    %10 = arith.mulf %8, %9 : vector<32x1xf32>
    %11 = arith.mulf %6, %6 : vector<32x128xf32>
    %cst_9 = arith.constant dense<0.000000e+00> : vector<32xf32>
    %12 = vector.multi_reduction <add>, %11, %cst_9 [1] : vector<32x128xf32> to vector<32xf32>
    %13 = vector.shape_cast %12 : vector<32xf32> to vector<32x1xf32>
    %cst_10 = arith.constant 1.562500e-02 : f32
    %14 = vector.broadcast %cst_10 : f32 to vector<32x1xf32>
    %15 = arith.mulf %13, %14 : vector<32x1xf32>
    %16 = arith.mulf %10, %10 : vector<32x1xf32>
    %17 = arith.subf %15, %16 : vector<32x1xf32>
    %18 = vector.broadcast %10 : vector<32x1xf32> to vector<32x128xf32>
    %19 = arith.subf %6, %18 : vector<32x128xf32>
    %cst_11 = arith.constant 9.99999974E-6 : f32
    %20 = vector.broadcast %cst_11 : f32 to vector<32x1xf32>
    %21 = arith.addf %17, %20 : vector<32x1xf32>
    %22 = math.rsqrt %21 : vector<32x1xf32>
    %23 = vector.broadcast %22 : vector<32x1xf32> to vector<32x128xf32>
    %24 = arith.mulf %19, %23 : vector<32x128xf32>
    %c1 = arith.constant 1 : index
    %c0_12 = arith.constant 0 : index
    %25 = vector.load %arg7[%c1, %c0_12] : memref<16x128xf32, #tpu.memory_space<vmem>>, vector<1x128xf32>
    %26 = vector.broadcast %25 : vector<1x128xf32> to vector<32x128xf32>
    %27 = arith.mulf %24, %26 : vector<32x128xf32>
    %c2 = arith.constant 2 : index
    %c0_13 = arith.constant 0 : index
    %28 = vector.load %arg7[%c2, %c0_13] : memref<16x128xf32, #tpu.memory_space<vmem>>, vector<1x128xf32>
    %29 = vector.broadcast %28 : vector<1x128xf32> to vector<32x128xf32>
    %30 = arith.addf %27, %29 : vector<32x128xf32>
    %cst_14 = arith.constant 0.000000e+00 : f32
    %31 = vector.broadcast %cst_14 : f32 to vector<32x128xf32>
    %32 = arith.maximumf %30, %31 : vector<32x128xf32>
    %33 = arith.truncf %32 : vector<32x128xf32> to vector<32x128xbf16>
    %c0_15 = arith.constant 0 : index
    %c0_16 = arith.constant 0 : index
    %34 = vector.load %arg4[%c0_15, %c0_16] : memref<128x128xbf16, #tpu.memory_space<vmem>>, vector<128x128xbf16>
    %cst_17 = arith.constant dense<0.000000e+00> : vector<32x128xf32>
    %35 = tpu.matmul %33, %34, %cst_17 {dimension_numbers = #tpu.dot_dimension_numbers<[1], [0], [0], [1], [0, 0, 1, 1], [], []>} : vector<32x128xbf16>, vector<128x128xbf16>, vector<32x128xf32> -> vector<32x128xf32>
    %c3 = arith.constant 3 : index
    %c0_18 = arith.constant 0 : index
    %36 = vector.load %arg7[%c3, %c0_18] : memref<16x128xf32, #tpu.memory_space<vmem>>, vector<1x128xf32>
    %37 = vector.broadcast %36 : vector<1x128xf32> to vector<32x128xf32>
    %38 = arith.addf %35, %37 : vector<32x128xf32>
    %cst_19 = arith.constant dense<0.000000e+00> : vector<32xf32>
    %39 = vector.multi_reduction <add>, %38, %cst_19 [1] : vector<32x128xf32> to vector<32xf32>
    %40 = vector.shape_cast %39 : vector<32xf32> to vector<32x1xf32>
    %cst_20 = arith.constant 1.562500e-02 : f32
    %41 = vector.broadcast %cst_20 : f32 to vector<32x1xf32>
    %42 = arith.mulf %40, %41 : vector<32x1xf32>
    %43 = arith.mulf %38, %38 : vector<32x128xf32>
    %cst_21 = arith.constant dense<0.000000e+00> : vector<32xf32>
    %44 = vector.multi_reduction <add>, %43, %cst_21 [1] : vector<32x128xf32> to vector<32xf32>
    %45 = vector.shape_cast %44 : vector<32xf32> to vector<32x1xf32>
    %cst_22 = arith.constant 1.562500e-02 : f32
    %46 = vector.broadcast %cst_22 : f32 to vector<32x1xf32>
    %47 = arith.mulf %45, %46 : vector<32x1xf32>
    %48 = arith.mulf %42, %42 : vector<32x1xf32>
    %49 = arith.subf %47, %48 : vector<32x1xf32>
    %50 = vector.broadcast %42 : vector<32x1xf32> to vector<32x128xf32>
    %51 = arith.subf %38, %50 : vector<32x128xf32>
    %cst_23 = arith.constant 9.99999974E-6 : f32
    %52 = vector.broadcast %cst_23 : f32 to vector<32x1xf32>
    %53 = arith.addf %49, %52 : vector<32x1xf32>
    %54 = math.rsqrt %53 : vector<32x1xf32>
    %55 = vector.broadcast %54 : vector<32x1xf32> to vector<32x128xf32>
    %56 = arith.mulf %51, %55 : vector<32x128xf32>
    %c4 = arith.constant 4 : index
    %c0_24 = arith.constant 0 : index
    %57 = vector.load %arg7[%c4, %c0_24] : memref<16x128xf32, #tpu.memory_space<vmem>>, vector<1x128xf32>
    %58 = vector.broadcast %57 : vector<1x128xf32> to vector<32x128xf32>
    %59 = arith.mulf %56, %58 : vector<32x128xf32>
    %c5 = arith.constant 5 : index
    %c0_25 = arith.constant 0 : index
    %60 = vector.load %arg7[%c5, %c0_25] : memref<16x128xf32, #tpu.memory_space<vmem>>, vector<1x128xf32>
    %61 = vector.broadcast %60 : vector<1x128xf32> to vector<32x128xf32>
    %62 = arith.addf %59, %61 : vector<32x128xf32>
    %cst_26 = arith.constant 0.000000e+00 : f32
    %63 = vector.broadcast %cst_26 : f32 to vector<32x128xf32>
    %64 = arith.maximumf %62, %63 : vector<32x128xf32>
    %65 = arith.truncf %64 : vector<32x128xf32> to vector<32x128xbf16>
    %c0_27 = arith.constant 0 : index
    %c0_28 = arith.constant 0 : index
    %66 = vector.load %arg5[%c0_27, %c0_28] : memref<128x128xbf16, #tpu.memory_space<vmem>>, vector<128x128xbf16>
    %cst_29 = arith.constant dense<0.000000e+00> : vector<32x128xf32>
    %67 = tpu.matmul %65, %66, %cst_29 {dimension_numbers = #tpu.dot_dimension_numbers<[1], [0], [0], [1], [0, 0, 1, 1], [], []>} : vector<32x128xbf16>, vector<128x128xbf16>, vector<32x128xf32> -> vector<32x128xf32>
    %c6 = arith.constant 6 : index
    %c0_30 = arith.constant 0 : index
    %68 = vector.load %arg7[%c6, %c0_30] : memref<16x128xf32, #tpu.memory_space<vmem>>, vector<1x128xf32>
    %69 = vector.broadcast %68 : vector<1x128xf32> to vector<32x128xf32>
    %70 = arith.addf %67, %69 : vector<32x128xf32>
    %cst_31 = arith.constant dense<0.000000e+00> : vector<32xf32>
    %71 = vector.multi_reduction <add>, %70, %cst_31 [1] : vector<32x128xf32> to vector<32xf32>
    %72 = vector.shape_cast %71 : vector<32xf32> to vector<32x1xf32>
    %cst_32 = arith.constant 3.125000e-02 : f32
    %73 = vector.broadcast %cst_32 : f32 to vector<32x1xf32>
    %74 = arith.mulf %72, %73 : vector<32x1xf32>
    %75 = arith.mulf %70, %70 : vector<32x128xf32>
    %cst_33 = arith.constant dense<0.000000e+00> : vector<32xf32>
    %76 = vector.multi_reduction <add>, %75, %cst_33 [1] : vector<32x128xf32> to vector<32xf32>
    %77 = vector.shape_cast %76 : vector<32xf32> to vector<32x1xf32>
    %cst_34 = arith.constant 3.125000e-02 : f32
    %78 = vector.broadcast %cst_34 : f32 to vector<32x1xf32>
    %79 = arith.mulf %77, %78 : vector<32x1xf32>
    %80 = arith.mulf %74, %74 : vector<32x1xf32>
    %81 = arith.subf %79, %80 : vector<32x1xf32>
    %82 = vector.broadcast %74 : vector<32x1xf32> to vector<32x128xf32>
    %83 = arith.subf %70, %82 : vector<32x128xf32>
    %cst_35 = arith.constant 9.99999974E-6 : f32
    %84 = vector.broadcast %cst_35 : f32 to vector<32x1xf32>
    %85 = arith.addf %81, %84 : vector<32x1xf32>
    %86 = math.rsqrt %85 : vector<32x1xf32>
    %87 = vector.broadcast %86 : vector<32x1xf32> to vector<32x128xf32>
    %88 = arith.mulf %83, %87 : vector<32x128xf32>
    %c7 = arith.constant 7 : index
    %c0_36 = arith.constant 0 : index
    %89 = vector.load %arg7[%c7, %c0_36] : memref<16x128xf32, #tpu.memory_space<vmem>>, vector<1x128xf32>
    %90 = vector.broadcast %89 : vector<1x128xf32> to vector<32x128xf32>
    %91 = arith.mulf %88, %90 : vector<32x128xf32>
    %c8 = arith.constant 8 : index
    %c0_37 = arith.constant 0 : index
    %92 = vector.load %arg7[%c8, %c0_37] : memref<16x128xf32, #tpu.memory_space<vmem>>, vector<1x128xf32>
    %93 = vector.broadcast %92 : vector<1x128xf32> to vector<32x128xf32>
    %94 = arith.addf %91, %93 : vector<32x128xf32>
    %95 = arith.truncf %94 : vector<32x128xf32> to vector<32x128xbf16>
    %c0_38 = arith.constant 0 : index
    %c0_39 = arith.constant 0 : index
    %96 = vector.load %arg6[%c0_38, %c0_39] : memref<128x128xbf16, #tpu.memory_space<vmem>>, vector<128x128xbf16>
    %cst_40 = arith.constant dense<0.000000e+00> : vector<32x128xf32>
    %97 = tpu.matmul %95, %96, %cst_40 {dimension_numbers = #tpu.dot_dimension_numbers<[1], [0], [0], [1], [0, 0, 1, 1], [], []>} : vector<32x128xbf16>, vector<128x128xbf16>, vector<32x128xf32> -> vector<32x128xf32>
    %c9 = arith.constant 9 : index
    %c0_41 = arith.constant 0 : index
    %98 = vector.load %arg7[%c9, %c0_41] : memref<16x128xf32, #tpu.memory_space<vmem>>, vector<1x128xf32>
    %99 = vector.broadcast %98 : vector<1x128xf32> to vector<32x128xf32>
    %100 = arith.addf %97, %99 : vector<32x128xf32>
    %101 = math.tanh %100 : vector<32x128xf32>
    %102 = vector.broadcast %0 : f32 to vector<32x128xf32>
    %103 = arith.mulf %101, %102 : vector<32x128xf32>
    %c0_42 = arith.constant 0 : index
    %c0_43 = arith.constant 0 : index
    %104 = vector.load %arg8[%c0_42, %c0_43] : memref<32x128xf32, #tpu.memory_space<vmem>>, vector<32x128xf32>
    tpu.vector_store %arg8[%c0_42, %c0_43], %103 {strides = array<i32>} : memref<32x128xf32, #tpu.memory_space<vmem>>, vector<32x128xf32>,
    return
  }
  func.func @transform_0(%arg0: i32) -> (i32, i32) {
    %c0_i32 = arith.constant 0 : i32
    %c0_i32_0 = arith.constant 0 : i32
    %c0_i32_1 = arith.constant 0 : i32
    return %c0_i32, %c0_i32_0 : i32, i32
  }
  func.func @transform_1(%arg0: i32) -> (i32, i32) {
    %c0_i32 = arith.constant 0 : i32
    %c0_i32_0 = arith.constant 0 : i32
    return %arg0, %c0_i32 : i32, i32
  }
  func.func @transform_2(%arg0: i32) -> (i32, i32) {
    %c0_i32 = arith.constant 0 : i32
    %c0_i32_0 = arith.constant 0 : i32
    %c0_i32_1 = arith.constant 0 : i32
    return %c0_i32, %c0_i32_0 : i32, i32
  }
  func.func @transform_3(%arg0: i32) -> (i32, i32) {
    %c0_i32 = arith.constant 0 : i32
    %c0_i32_0 = arith.constant 0 : i32
    %c0_i32_1 = arith.constant 0 : i32
    return %c0_i32, %c0_i32_0 : i32, i32
  }
  func.func @transform_4(%arg0: i32) -> (i32, i32) {
    %c0_i32 = arith.constant 0 : i32
    %c0_i32_0 = arith.constant 0 : i32
    %c0_i32_1 = arith.constant 0 : i32
    return %c0_i32, %c0_i32_0 : i32, i32
  }
  func.func @transform_5(%arg0: i32) -> (i32, i32) {
    %c0_i32 = arith.constant 0 : i32
    %c0_i32_0 = arith.constant 0 : i32
    %c0_i32_1 = arith.constant 0 : i32
    return %c0_i32, %c0_i32_0 : i32, i32
  }
  func.func @transform_6(%arg0: i32) -> (i32, i32) {
    %c0_i32 = arith.constant 0 : i32
    %c0_i32_0 = arith.constant 0 : i32
    %c0_i32_1 = arith.constant 0 : i32
    return %c0_i32, %c0_i32_0 : i32, i32
  }
  func.func @transform_7(%arg0: i32) -> (i32, i32) {
    %c0_i32 = arith.constant 0 : i32
    %c0_i32_0 = arith.constant 0 : i32
    return %arg0, %c0_i32 : i32, i32
  }
}

module attributes {stable_mosaic.version = 11 : i64} {
  func.func @actor_kernel(%arg0: i32, %arg1: memref<1x1xf32, #tpu.memory_space<smem>>, %arg2: memref<32x128xbf16, #tpu.memory_space<vmem>>, %arg3: memref<128x128xbf16, #tpu.memory_space<vmem>>, %arg4: memref<128x128xbf16, #tpu.memory_space<vmem>>, %arg5: memref<128x128xbf16, #tpu.memory_space<vmem>>, %arg6: memref<128x128xbf16, #tpu.memory_space<vmem>>, %arg7: memref<16x128xf32, #tpu.memory_space<vmem>>, %arg8: memref<32x128xf32, #tpu.memory_space<vmem>>) attributes {dimension_semantics = [#tpu.dimension_semantics<parallel>], iteration_bounds = array<i64: 2>, scalar_prefetch = 0 : i64, scratch_operands = 0 : i64, tpu.core_type = #tpu.core_type<tc>, window_params = [{transform_indices = @transform_0, window_bounds = array<i64: 1, 1>}, {transform_indices = @transform_1, window_bounds = array<i64: 32, 128>}, {pipeline_mode = #tpu.pipeline_mode<synchronous>, transform_indices = @transform_2, window_bounds = array<i64: 128, 128>}, {pipeline_mode = #tpu.pipeline_mode<synchronous>, transform_indices = @transform_3, window_bounds = array<i64: 128, 128>}, {pipeline_mode = #tpu.pipeline_mode<synchronous>, transform_indices = @transform_4, window_bounds = array<i64: 128, 128>}, {pipeline_mode = #tpu.pipeline_mode<synchronous>, transform_indices = @transform_5, window_bounds = array<i64: 128, 128>}, {pipeline_mode = #tpu.pipeline_mode<synchronous>, transform_indices = @transform_6, window_bounds = array<i64: 16, 128>}, {transform_indices = @transform_7, window_bounds = array<i64: 32, 128>}]} {
    %c0 = arith.constant 0 : index
    %c0_0 = arith.constant 0 : index
    %0 = memref.load %arg1[%c0, %c0_0] : memref<1x1xf32, #tpu.memory_space<smem>>
    %c0_1 = arith.constant 0 : index
    %c0_2 = arith.constant 0 : index
    %1 = vector.load %arg2[%c0_1, %c0_2] : memref<32x128xbf16, #tpu.memory_space<vmem>>, vector<32x128xbf16>
    %c0_3 = arith.constant 0 : index
    %c0_4 = arith.constant 0 : index
    %2 = vector.load %arg3[%c0_3, %c0_4] : memref<128x128xbf16, #tpu.memory_space<vmem>>, vector<128x128xbf16>
    %cst = arith.constant dense<0.000000e+00> : vector<32x128xf32>
    %3 = tpu.matmul %1, %2, %cst {dimension_numbers = #tpu.dot_dimension_numbers<[1], [0], [0], [1], [0, 0, 1, 1], [], []>} : vector<32x128xbf16>, vector<128x128xbf16>, vector<32x128xf32> -> vector<32x128xf32>
    %c0_5 = arith.constant 0 : index
    %c0_6 = arith.constant 0 : index
    %4 = vector.load %arg7[%c0_5, %c0_6] : memref<16x128xf32, #tpu.memory_space<vmem>>, vector<1x128xf32>
    %5 = vector.broadcast %4 : vector<1x128xf32> to vector<32x128xf32>
    %6 = arith.addf %3, %5 : vector<32x128xf32>
    %cst_7 = arith.constant dense<0.000000e+00> : vector<32xf32>
    %7 = vector.multi_reduction <add>, %6, %cst_7 [1] : vector<32x128xf32> to vector<32xf32>
    %8 = vector.shape_cast %7 : vector<32xf32> to vector<32x1xf32>
    %cst_8 = arith.constant 1.562500e-02 : f32
    %9 = vector.broadcast %cst_8 : f32 to vector<32x1xf32>
    %10 = arith.mulf %8, %9 : vector<32x1xf32>
    %11 = arith.mulf %6, %6 : vector<32x128xf32>
    %cst_9 = arith.constant dense<0.000000e+00> : vector<32xf32>
    %12 = vector.multi_reduction <add>, %11, %cst_9 [1] : vector<32x128xf32> to vector<32xf32>
    %13 = vector.shape_cast %12 : vector<32xf32> to vector<32x1xf32>
    %cst_10 = arith.constant 1.562500e-02 : f32
    %14 = vector.broadcast %cst_10 : f32 to vector<32x1xf32>
    %15 = arith.mulf %13, %14 : vector<32x1xf32>
    %16 = arith.mulf %10, %10 : vector<32x1xf32>
    %17 = arith.subf %15, %16 : vector<32x1xf32>
    %18 = vector.broadcast %10 : vector<32x1xf32> to vector<32x128xf32>
    %19 = arith.subf %6, %18 : vector<32x128xf32>
    %cst_11 = arith.constant 9.99999974E-6 : f32
    %20 = vector.broadcast %cst_11 : f32 to vector<32x1xf32>
    %21 = arith.addf %17, %20 : vector<32x1xf32>
    %22 = math.rsqrt %21 : vector<32x1xf32>
    %23 = vector.broadcast %22 : vector<32x1xf32> to vector<32x128xf32>
    %24 = arith.mulf %19, %23 : vector<32x128xf32>
    %c1 = arith.constant 1 : index
    %c0_12 = arith.constant 0 : index
    %25 = vector.load %arg7[%c1, %c0_12] : memref<16x128xf32, #tpu.memory_space<vmem>>, vector<1x128xf32>
    %26 = vector.broadcast %25 : vector<1x128xf32> to vector<32x128xf32>
    %27 = arith.mulf %24, %26 : vector<32x128xf32>
    %c2 = arith.constant 2 : index
    %c0_13 = arith.constant 0 : index
    %28 = vector.load %arg7[%c2, %c0_13] : memref<16x128xf32, #tpu.memory_space<vmem>>, vector<1x128xf32>
    %29 = vector.broadcast %28 : vector<1x128xf32> to vector<32x128xf32>
    %30 = arith.addf %27, %29 : vector<32x128xf32>
    %cst_14 = arith.constant 0.000000e+00 : f32
    %31 = vector.broadcast %cst_14 : f32 to vector<32x128xf32>
    %32 = arith.maximumf %30, %31 : vector<32x128xf32>
    %33 = arith.truncf %32 : vector<32x128xf32> to vector<32x128xbf16>
    %c0_15 = arith.constant 0 : index
    %c0_16 = arith.constant 0 : index
    %34 = vector.load %arg4[%c0_15, %c0_16] : memref<128x128xbf16, #tpu.memory_space<vmem>>, vector<128x128xbf16>
    %cst_17 = arith.constant dense<0.000000e+00> : vector<32x128xf32>
    %35 = tpu.matmul %33, %34, %cst_17 {dimension_numbers = #tpu.dot_dimension_numbers<[1], [0], [0], [1], [0, 0, 1, 1], [], []>} : vector<32x128xbf16>, vector<128x128xbf16>, vector<32x128xf32> -> vector<32x128xf32>
    %c3 = arith.constant 3 : index
    %c0_18 = arith.constant 0 : index
    %36 = vector.load %arg7[%c3, %c0_18] : memref<16x128xf32, #tpu.memory_space<vmem>>, vector<1x128xf32>
    %37 = vector.broadcast %36 : vector<1x128xf32> to vector<32x128xf32>
    %38 = arith.addf %35, %37 : vector<32x128xf32>
    %cst_19 = arith.constant dense<0.000000e+00> : vector<32xf32>
    %39 = vector.multi_reduction <add>, %38, %cst_19 [1] : vector<32x128xf32> to vector<32xf32>
    %40 = vector.shape_cast %39 : vector<32xf32> to vector<32x1xf32>
    %cst_20 = arith.constant 1.562500e-02 : f32
    %41 = vector.broadcast %cst_20 : f32 to vector<32x1xf32>
    %42 = arith.mulf %40, %41 : vector<32x1xf32>
    %43 = arith.mulf %38, %38 : vector<32x128xf32>
    %cst_21 = arith.constant dense<0.000000e+00> : vector<32xf32>
    %44 = vector.multi_reduction <add>, %43, %cst_21 [1] : vector<32x128xf32> to vector<32xf32>
    %45 = vector.shape_cast %44 : vector<32xf32> to vector<32x1xf32>
    %cst_22 = arith.constant 1.562500e-02 : f32
    %46 = vector.broadcast %cst_22 : f32 to vector<32x1xf32>
    %47 = arith.mulf %45, %46 : vector<32x1xf32>
    %48 = arith.mulf %42, %42 : vector<32x1xf32>
    %49 = arith.subf %47, %48 : vector<32x1xf32>
    %50 = vector.broadcast %42 : vector<32x1xf32> to vector<32x128xf32>
    %51 = arith.subf %38, %50 : vector<32x128xf32>
    %cst_23 = arith.constant 9.99999974E-6 : f32
    %52 = vector.broadcast %cst_23 : f32 to vector<32x1xf32>
    %53 = arith.addf %49, %52 : vector<32x1xf32>
    %54 = math.rsqrt %53 : vector<32x1xf32>
    %55 = vector.broadcast %54 : vector<32x1xf32> to vector<32x128xf32>
    %56 = arith.mulf %51, %55 : vector<32x128xf32>
    %c4 = arith.constant 4 : index
    %c0_24 = arith.constant 0 : index
    %57 = vector.load %arg7[%c4, %c0_24] : memref<16x128xf32, #tpu.memory_space<vmem>>, vector<1x128xf32>
    %58 = vector.broadcast %57 : vector<1x128xf32> to vector<32x128xf32>
    %59 = arith.mulf %56, %58 : vector<32x128xf32>
    %c5 = arith.constant 5 : index
    %c0_25 = arith.constant 0 : index
    %60 = vector.load %arg7[%c5, %c0_25] : memref<16x128xf32, #tpu.memory_space<vmem>>, vector<1x128xf32>
    %61 = vector.broadcast %60 : vector<1x128xf32> to vector<32x128xf32>
    %62 = arith.addf %59, %61 : vector<32x128xf32>
    %cst_26 = arith.constant 0.000000e+00 : f32
    %63 = vector.broadcast %cst_26 : f32 to vector<32x128xf32>
    %64 = arith.maximumf %62, %63 : vector<32x128xf32>
    %65 = arith.truncf %64 : vector<32x128xf32> to vector<32x128xbf16>
    %c0_27 = arith.constant 0 : index
    %c0_28 = arith.constant 0 : index
    %66 = vector.load %arg5[%c0_27, %c0_28] : memref<128x128xbf16, #tpu.memory_space<vmem>>, vector<128x128xbf16>
    %cst_29 = arith.constant dense<0.000000e+00> : vector<32x128xf32>
    %67 = tpu.matmul %65, %66, %cst_29 {dimension_numbers = #tpu.dot_dimension_numbers<[1], [0], [0], [1], [0, 0, 1, 1], [], []>} : vector<32x128xbf16>, vector<128x128xbf16>, vector<32x128xf32> -> vector<32x128xf32>
    %c6 = arith.constant 6 : index
    %c0_30 = arith.constant 0 : index
    %68 = vector.load %arg7[%c6, %c0_30] : memref<16x128xf32, #tpu.memory_space<vmem>>, vector<1x128xf32>
    %69 = vector.broadcast %68 : vector<1x128xf32> to vector<32x128xf32>
    %70 = arith.addf %67, %69 : vector<32x128xf32>
    %cst_31 = arith.constant dense<0.000000e+00> : vector<32xf32>
    %71 = vector.multi_reduction <add>, %70, %cst_31 [1] : vector<32x128xf32> to vector<32xf32>
    %72 = vector.shape_cast %71 : vector<32xf32> to vector<32x1xf32>
    %cst_32 = arith.constant 3.125000e-02 : f32
    %73 = vector.broadcast %cst_32 : f32 to vector<32x1xf32>
    %74 = arith.mulf %72, %73 : vector<32x1xf32>
    %75 = arith.mulf %70, %70 : vector<32x128xf32>
    %cst_33 = arith.constant dense<0.000000e+00> : vector<32xf32>
    %76 = vector.multi_reduction <add>, %75, %cst_33 [1] : vector<32x128xf32> to vector<32xf32>
    %77 = vector.shape_cast %76 : vector<32xf32> to vector<32x1xf32>
    %cst_34 = arith.constant 3.125000e-02 : f32
    %78 = vector.broadcast %cst_34 : f32 to vector<32x1xf32>
    %79 = arith.mulf %77, %78 : vector<32x1xf32>
    %80 = arith.mulf %74, %74 : vector<32x1xf32>
    %81 = arith.subf %79, %80 : vector<32x1xf32>
    %82 = vector.broadcast %74 : vector<32x1xf32> to vector<32x128xf32>
    %83 = arith.subf %70, %82 : vector<32x128xf32>
    %cst_35 = arith.constant 9.99999974E-6 : f32
    %84 = vector.broadcast %cst_35 : f32 to vector<32x1xf32>
    %85 = arith.addf %81, %84 : vector<32x1xf32>
    %86 = math.rsqrt %85 : vector<32x1xf32>
    %87 = vector.broadcast %86 : vector<32x1xf32> to vector<32x128xf32>
    %88 = arith.mulf %83, %87 : vector<32x128xf32>
    %c7 = arith.constant 7 : index
    %c0_36 = arith.constant 0 : index
    %89 = vector.load %arg7[%c7, %c0_36] : memref<16x128xf32, #tpu.memory_space<vmem>>, vector<1x128xf32>
    %90 = vector.broadcast %89 : vector<1x128xf32> to vector<32x128xf32>
    %91 = arith.mulf %88, %90 : vector<32x128xf32>
    %c8 = arith.constant 8 : index
    %c0_37 = arith.constant 0 : index
    %92 = vector.load %arg7[%c8, %c0_37] : memref<16x128xf32, #tpu.memory_space<vmem>>, vector<1x128xf32>
    %93 = vector.broadcast %92 : vector<1x128xf32> to vector<32x128xf32>
    %94 = arith.addf %91, %93 : vector<32x128xf32>
    %95 = arith.truncf %94 : vector<32x128xf32> to vector<32x128xbf16>
    %c0_38 = arith.constant 0 : index
    %c0_39 = arith.constant 0 : index
    %96 = vector.load %arg6[%c0_38, %c0_39] : memref<128x128xbf16, #tpu.memory_space<vmem>>, vector<128x128xbf16>
    %cst_40 = arith.constant dense<0.000000e+00> : vector<32x128xf32>
    %97 = tpu.matmul %95, %96, %cst_40 {dimension_numbers = #tpu.dot_dimension_numbers<[1], [0], [0], [1], [0, 0, 1, 1], [], []>} : vector<32x128xbf16>, vector<128x128xbf16>, vector<32x128xf32> -> vector<32x128xf32>
    %c9 = arith.constant 9 : index
    %c0_41 = arith.constant 0 : index
    %98 = vector.load %arg7[%c9, %c0_41] : memref<16x128xf32, #tpu.memory_space<vmem>>, vector<1x128xf32>
    %99 = vector.broadcast %98 : vector<1x128xf32> to vector<32x128xf32>
    %100 = arith.addf %97, %99 : vector<32x128xf32>
    %101 = math.tanh %100 : vector<32x128xf32>
    %102 = vector.broadcast %0 : f32 to vector<32x128xf32>
    %103 = arith.mulf %101, %102 : vector<32x128xf32>
    %c0_42 = arith.constant 0 : index
    %c0_43 = arith.constant 0 : index
    %104 = vector.load %arg8[%c0_42, %c0_43] : memref<32x128xf32, #tpu.memory_space<vmem>>, vector<32x128xf32>
    tpu.vector_store %arg8[%c0_42, %c0_43], %103 {strides = array<i32>} : memref<32x128xf32, #tpu.memory_space<vmem>>, vector<32x128xf32>,
    return
  }
  func.func @transform_0(%arg0: i32) -> (i32, i32) {
    %c0_i32 = arith.constant 0 : i32
    %c0_i32_0 = arith.constant 0 : i32
    %c0_i32_1 = arith.constant 0 : i32
    return %c0_i32, %c0_i32_0 : i32, i32
  }
  func.func @transform_1(%arg0: i32) -> (i32, i32) {
    %c0_i32 = arith.constant 0 : i32
    %c0_i32_0 = arith.constant 0 : i32
    return %arg0, %c0_i32 : i32, i32
  }
  func.func @transform_2(%arg0: i32) -> (i32, i32) {
    %c0_i32 = arith.constant 0 : i32
    %c0_i32_0 = arith.constant 0 : i32
    %c0_i32_1 = arith.constant 0 : i32
    return %c0_i32, %c0_i32_0 : i32, i32
  }
  func.func @transform_3(%arg0: i32) -> (i32, i32) {
    %c0_i32 = arith.constant 0 : i32
    %c0_i32_0 = arith.constant 0 : i32
    %c0_i32_1 = arith.constant 0 : i32
    return %c0_i32, %c0_i32_0 : i32, i32
  }
  func.func @transform_4(%arg0: i32) -> (i32, i32) {
    %c0_i32 = arith.constant 0 : i32
    %c0_i32_0 = arith.constant 0 : i32
    %c0_i32_1 = arith.constant 0 : i32
    return %c0_i32, %c0_i32_0 : i32, i32
  }
  func.func @transform_5(%arg0: i32) -> (i32, i32) {
    %c0_i32 = arith.constant 0 : i32
    %c0_i32_0 = arith.constant 0 : i32
    %c0_i32_1 = arith.constant 0 : i32
    return %c0_i32, %c0_i32_0 : i32, i32
  }
  func.func @transform_6(%arg0: i32) -> (i32, i32) {
    %c0_i32 = arith.constant 0 : i32
    %c0_i32_0 = arith.constant 0 : i32
    %c0_i32_1 = arith.constant 0 : i32
    return %c0_i32, %c0_i32_0 : i32, i32
  }
  func.func @transform_7(%arg0: i32) -> (i32, i32) {
    %c0_i32 = arith.constant 0 : i32
    %c0_i32_0 = arith.constant 0 : i32
    return %arg0, %c0_i32 : i32, i32
  }
}

</mosaic_0001>

<llo_original>
// kernel: tpu_custom_call.1
$region0: #{tpu_custom_call.1}
  #allocation0 [shape = 'u32[]', space=smem, size = 0x4, offset = 0x4, fixed_abs, tag = 'smem constant byte address 0x4 - core index']
  #allocation1 [shape = 'u32[144,128]{1,0:T(1,128)}', space=vmem, size = 0x12000, scoped, tag = 'internal scratch']
  #allocation2 [shape = 'f32[1,1]{1,0:T(1,128)S(6)}', space=smem, size = 0x200, scoped, tag = 'scoped memory for tpu_custom_call.1']
  %s0 = inlined_call_operand.<no memory space> [shape: f32[1,1], index: 0, kind: input, shape index: {}]
  %s1 = inlined_call_operand.hbm [shape: bf16[64,128], index: 1, kind: input, shape index: {}]
  %s2 = inlined_call_operand.hbm [shape: bf16[128,128], index: 2, kind: input, shape index: {}]
  %s3 = inlined_call_operand.hbm [shape: bf16[128,128], index: 3, kind: input, shape index: {}]
  %s4 = inlined_call_operand.hbm [shape: bf16[128,128], index: 4, kind: input, shape index: {}]
  %s5 = inlined_call_operand.hbm [shape: bf16[128,128], index: 5, kind: input, shape index: {}]
  %s6 = inlined_call_operand.hbm [shape: f32[16,128], index: 6, kind: input, shape index: {}]
  %s7 = inlined_call_operand.hbm [shape: f32[64,128], index: 7, kind: output, shape index: {}]
  %s8 = sld [smem:[#allocation0]]
  $region85: #{tpu_custom_call.1} parent=0
    _
  %s10 = ssub.s32 1, %s8
  %s11 = scalar_select 0, %s10, %s8
  %12 = sst [smem:[#allocation2]] %s0
  $region1: #{tpu_custom_call.1} parent=0
    #allocation3 [shape = 'u8[16384]{0}', space=vmem, size = 0x4000, scoped, tag = 'input window, operand 1']
    #allocation4 [shape = 's32[2]{0}', space=sflag, size = 0x8, scoped, tag = 'scoped memory for tpu_custom_call.1']
    #allocation5 [shape = 's32[2]{0}', space=sflag, size = 0x8, scoped, tag = 'scoped memory for tpu_custom_call.1']
    #allocation6 [shape = 'u8[32768]{0}', space=vmem, size = 0x8000, scoped, tag = 'input window, operand 2, single buffered']
    #allocation7 [shape = 's32[1]{0}', space=sflag, size = 0x4, scoped, tag = 'scoped memory for tpu_custom_call.1']
    #allocation8 [shape = 'u8[32768]{0}', space=vmem, size = 0x8000, scoped, tag = 'input window, operand 3, single buffered']
    #allocation9 [shape = 'u8[32768]{0}', space=vmem, size = 0x8000, scoped, tag = 'input window, operand 4, single buffered']
    #allocation10 [shape = 's32[1]{0}', space=sflag, size = 0x4, scoped, tag = 'scoped memory for tpu_custom_call.1']
    #allocation11 [shape = 'u8[32768]{0}', space=vmem, size = 0x8000, scoped, tag = 'input window, operand 5, single buffered']
    #allocation12 [shape = 'u8[8192]{0}', space=vmem, size = 0x2000, scoped, tag = 'input window, operand 6, single buffered']
    #allocation13 [shape = 's32[1]{0}', space=sflag, size = 0x4, scoped, tag = 'scoped memory for tpu_custom_call.1']
    #allocation14 [shape = 'u8[32768]{0}', space=vmem, size = 0x8000, scoped, tag = 'output window, operand 0']
    %13 = vsyncpa [#allocation4], 0
    %s14 = scalar_lea.sflag [#allocation4], 1
    %15 = vsyncpa %s14, 0
    %16 = vsyncpa [#allocation7], 0
    %17 = vsyncpa [#allocation10], 0
    %18 = vsyncpa [#allocation13], 0
    %19 = vsyncpa [#allocation5], 0
    %s20 = scalar_lea.sflag [#allocation5], 1
    %21 = vsyncpa %s20, 0
    loop: start=0, step=1, limit=4
    $region2: #{tpu_custom_call.1} parent=1 // loop_pre_header
      _
    $region3: #{tpu_custom_call.1} parent=1 // loop_header
      %s23 = sphi 0, %s27
      %p24 = scmp.ge.s32.totalorder %s23, 4
      %s31 = sphi 0, %s31
      %s33 = sphi 0, %s31
      %s34 = sphi 0, %s33
      %s48 = sphi 0, %s34
      %s54 = sphi 0, %s56
      %s57 = sphi 0, %s54
      %s58 = sphi 0, %s57
      %s74 = sphi 0, %s58
      %s78 = sphi 0, %s78
      %s80 = sphi 0, %s78
      %s81 = sphi 0, %s80
      %s95 = sphi 0, %s81
      %s99 = sphi 0, %s99
      %s101 = sphi 0, %s99
      %s102 = sphi 0, %s101
      %s116 = sphi 0, %s102
      %s120 = sphi 0, %s120
      %s122 = sphi 0, %s120
      %s123 = sphi 0, %s122
      %s137 = sphi 0, %s123
      %s141 = sphi 0, %s141
      %s143 = sphi 0, %s141
      %s144 = sphi 0, %s143
      %s158 = sphi 0, %s144
      %s162 = sphi 0, %s162
      %s164 = sphi 0, %s162
      %s165 = sphi 0, %s164
      %s179 = sphi 0, %s165
      %s185 = sphi 0, %s187
      %s188 = sphi 0, %s185
      %s189 = sphi 0, %s188
      %s205 = sphi 0, %s189
    $region4: #{tpu_custom_call.1} parent=1 // loop_header_branch
      %26 = sbr.rel (%p24) target = $region8
    $region5: #{tpu_custom_call.1} parent=1 // loop_body
      %s28 = ssub.s32 %s23, 1
      %s29 = ssub.s32 %s23, 2
      %s30 = sadd.s32 %s23, 1
      %s32 = sadd.s32 %s31, 1
      %p35 = scmp.eq.s32.totalorder %s23, 1
      %p36 = scmp.ne.s32.totalorder %s31, %s33
      %p37 = scmp.eq.s32.totalorder %s23, 0
      %p38 = por %p36, %p37
      %p39 = scmp.ne.s32.totalorder %s31, %s33
      %p40 = scmp.eq.s32.totalorder %s28, 1
      %p41 = por %p39, %p40
      %p42 = scmp.ne.s32.totalorder %s33, %s34
      %p43 = scmp.eq.s32.totalorder %s28, 0
      %p44 = por %p42, %p43
      %p45 = scmp.ne.s32.totalorder %s33, %s34
      %p46 = scmp.eq.s32.totalorder %s29, 1
      %p47 = por %p45, %p46
      %p49 = scmp.ne.s32.totalorder %s34, %s48
      %p50 = scmp.eq.s32.totalorder %s29, 0
      %p51 = por %p49, %p50
      %s52 = ssub.s32 %s23, %s30
      %p53 = scmp.eq.s32.totalorder %s52, 0
      %s55 = sadd.s32 %s54, 1
      %s56 = scalar_select %p53, %s54, %s55
      %p59 = pneg %p53
      %p60 = scmp.eq.s32.totalorder %s23, 1
      %p61 = por %p59, %p60
      %p62 = scmp.ne.s32.totalorder %s54, %s57
      %p63 = scmp.eq.s32.totalorder %s23, 0
      %p64 = por %p62, %p63
      %p65 = scmp.ne.s32.totalorder %s54, %s57
      %p66 = scmp.eq.s32.totalorder %s28, 1
      %p67 = por %p65, %p66
      %p68 = scmp.ne.s32.totalorder %s57, %s58
      %p69 = scmp.eq.s32.totalorder %s28, 0
      %p70 = por %p68, %p69
      %p71 = scmp.ne.s32.totalorder %s57, %s58
      %p72 = scmp.eq.s32.totalorder %s29, 1
      %p73 = por %p71, %p72
      %p75 = scmp.ne.s32.totalorder %s58, %s74
      %p76 = scmp.eq.s32.totalorder %s29, 0
      %p77 = por %p75, %p76
      %s79 = sadd.s32 %s78, 1
      %p82 = scmp.eq.s32.totalorder %s23, 1
      %p83 = scmp.ne.s32.totalorder %s78, %s80
      %p84 = scmp.eq.s32.totalorder %s23, 0
      %p85 = por %p83, %p84
      %p86 = scmp.ne.s32.totalorder %s78, %s80
      %p87 = scmp.eq.s32.totalorder %s28, 1
      %p88 = por %p86, %p87
      %p89 = scmp.ne.s32.totalorder %s80, %s81
      %p90 = scmp.eq.s32.totalorder %s28, 0
      %p91 = por %p89, %p90
      %p92 = scmp.ne.s32.totalorder %s80, %s81
      %p93 = scmp.eq.s32.totalorder %s29, 1
      %p94 = por %p92, %p93
      %p96 = scmp.ne.s32.totalorder %s81, %s95
      %p97 = scmp.eq.s32.totalorder %s29, 0
      %p98 = por %p96, %p97
      %s100 = sadd.s32 %s99, 1
      %p103 = scmp.eq.s32.totalorder %s23, 1
      %p104 = scmp.ne.s32.totalorder %s99, %s101
      %p105 = scmp.eq.s32.totalorder %s23, 0
      %p106 = por %p104, %p105
      %p107 = scmp.ne.s32.totalorder %s99, %s101
      %p108 = scmp.eq.s32.totalorder %s28, 1
      %p109 = por %p107, %p108
      %p110 = scmp.ne.s32.totalorder %s101, %s102
      %p111 = scmp.eq.s32.totalorder %s28, 0
      %p112 = por %p110, %p111
      %p113 = scmp.ne.s32.totalorder %s101, %s102
      %p114 = scmp.eq.s32.totalorder %s29, 1
      %p115 = por %p113, %p114
      %p117 = scmp.ne.s32.totalorder %s102, %s116
      %p118 = scmp.eq.s32.totalorder %s29, 0
      %p119 = por %p117, %p118
      %s121 = sadd.s32 %s120, 1
      %p124 = scmp.eq.s32.totalorder %s23, 1
      %p125 = scmp.ne.s32.totalorder %s120, %s122
      %p126 = scmp.eq.s32.totalorder %s23, 0
      %p127 = por %p125, %p126
      %p128 = scmp.ne.s32.totalorder %s120, %s122
      %p129 = scmp.eq.s32.totalorder %s28, 1
      %p130 = por %p128, %p129
      %p131 = scmp.ne.s32.totalorder %s122, %s123
      %p132 = scmp.eq.s32.totalorder %s28, 0
      %p133 = por %p131, %p132
      %p134 = scmp.ne.s32.totalorder %s122, %s123
      %p135 = scmp.eq.s32.totalorder %s29, 1
      %p136 = por %p134, %p135
      %p138 = scmp.ne.s32.totalorder %s123, %s137
      %p139 = scmp.eq.s32.totalorder %s29, 0
      %p140 = por %p138, %p139
      %s142 = sadd.s32 %s141, 1
      %p145 = scmp.eq.s32.totalorder %s23, 1
      %p146 = scmp.ne.s32.totalorder %s141, %s143
      %p147 = scmp.eq.s32.totalorder %s23, 0
      %p148 = por %p146, %p147
      %p149 = scmp.ne.s32.totalorder %s141, %s143
      %p150 = scmp.eq.s32.totalorder %s28, 1
      %p151 = por %p149, %p150
      %p152 = scmp.ne.s32.totalorder %s143, %s144
      %p153 = scmp.eq.s32.totalorder %s28, 0
      %p154 = por %p152, %p153
      %p155 = scmp.ne.s32.totalorder %s143, %s144
      %p156 = scmp.eq.s32.totalorder %s29, 1
      %p157 = por %p155, %p156
      %p159 = scmp.ne.s32.totalorder %s144, %s158
      %p160 = scmp.eq.s32.totalorder %s29, 0
      %p161 = por %p159, %p160
      %s163 = sadd.s32 %s162, 1
      %p166 = scmp.eq.s32.totalorder %s23, 1
      %p167 = scmp.ne.s32.totalorder %s162, %s164
      %p168 = scmp.eq.s32.totalorder %s23, 0
      %p169 = por %p167, %p168
      %p170 = scmp.ne.s32.totalorder %s162, %s164
      %p171 = scmp.eq.s32.totalorder %s28, 1
      %p172 = por %p170, %p171
      %p173 = scmp.ne.s32.totalorder %s164, %s165
      %p174 = scmp.eq.s32.totalorder %s28, 0
      %p175 = por %p173, %p174
      %p176 = scmp.ne.s32.totalorder %s164, %s165
      %p177 = scmp.eq.s32.totalorder %s29, 1
      %p178 = por %p176, %p177
      %p180 = scmp.ne.s32.totalorder %s165, %s179
      %p181 = scmp.eq.s32.totalorder %s29, 0
      %p182 = por %p180, %p181
      %s183 = ssub.s32 %s23, %s30
      %p184 = scmp.eq.s32.totalorder %s183, 0
      %s186 = sadd.s32 %s185, 1
      %s187 = scalar_select %p184, %s185, %s186
      %p190 = pneg %p184
      %p191 = scmp.eq.s32.totalorder %s23, 1
      %p192 = por %p190, %p191
      %p193 = scmp.ne.s32.totalorder %s185, %s188
      %p194 = scmp.eq.s32.totalorder %s23, 0
      %p195 = por %p193, %p194
      %p196 = scmp.ne.s32.totalorder %s185, %s188
      %p197 = scmp.eq.s32.totalorder %s28, 1
      %p198 = por %p196, %p197
      %p199 = scmp.ne.s32.totalorder %s188, %s189
      %p200 = scmp.eq.s32.totalorder %s28, 0
      %p201 = por %p199, %p200
      %p202 = scmp.ne.s32.totalorder %s188, %s189
      %p203 = scmp.eq.s32.totalorder %s29, 1
      %p204 = por %p202, %p203
      %p206 = scmp.ne.s32.totalorder %s189, %s205
      %p207 = scmp.eq.s32.totalorder %s29, 0
      %p208 = por %p206, %p207
      %p209 = scmp.le.s32.totalorder 1, %s23
      %p210 = scmp.lt.s32.totalorder %s23, 3
      %p211 = pnand %p209, %p210
      %p212 = pneg %p211
      // Predicated region
      $region9: #{tpu_custom_call.1} parent=5 // pred_check
        _
      $region10: #{tpu_custom_call.1} parent=5 // pred_check_branch
        %214 = sbr.rel (%p211) target = $region12
      $region11: #{tpu_custom_call.1} parent=5 // pred_region
        %s215 = ssub.s32 %s23, 1
        // Predicated region
        $region13: #{tpu_custom_call.1} parent=11 // pred_check
          %p216 = pneg %p44
        $region14: #{tpu_custom_call.1} parent=11 // pred_check_branch
          %218 = sbr.rel (%p216) target = $region16
        $region15: #{tpu_custom_call.1} parent=11 // pred_region
          _
        $region16: #{tpu_custom_call.1} parent=11 // pred_fallthru
          _
        // Predicated region
        $region17: #{tpu_custom_call.1} parent=11 // pred_check
          %p219 = pneg %p91
        $region18: #{tpu_custom_call.1} parent=11 // pred_check_branch
          %221 = sbr.rel (%p219) target = $region20
        $region19: #{tpu_custom_call.1} parent=11 // pred_region
          %s223 = ssub.s32 1024, 1024
          %224 = vsyncadd [#allocation7], %s223
          %s225 = sshll.u32 [#allocation6], 4
          %s226 = int_to_ptr.vmem [resolvable:$true] %s225
          %231 = dma.hbm_to_vmem [thread:$0]  %s2, 1024, %s226, [#allocation7], 64, 64, 4
        $region20: #{tpu_custom_call.1} parent=11 // pred_fallthru
          _
        // Predicated region
        $region21: #{tpu_custom_call.1} parent=11 // pred_check
          %p232 = pneg %p112
        $region22: #{tpu_custom_call.1} parent=11 // pred_check_branch
          %234 = sbr.rel (%p232) target = $region24
        $region23: #{tpu_custom_call.1} parent=11 // pred_region
          %s236 = ssub.s32 1024, 1024
          %237 = vsyncadd [#allocation7], %s236
          %s238 = sshll.u32 [#allocation8], 4
          %s239 = int_to_ptr.vmem [resolvable:$true] %s238
          %244 = dma.hbm_to_vmem [thread:$0]  %s3, 1024, %s239, [#allocation7], 64, 64, 4
        $region24: #{tpu_custom_call.1} parent=11 // pred_fallthru
          _
        // Predicated region
        $region25: #{tpu_custom_call.1} parent=11 // pred_check
          %p245 = pneg %p133
        $region26: #{tpu_custom_call.1} parent=11 // pred_check_branch
          %247 = sbr.rel (%p245) target = $region28
        $region27: #{tpu_custom_call.1} parent=11 // pred_region
          %s249 = ssub.s32 1024, 1024
          %250 = vsyncadd [#allocation10], %s249
          %s251 = sshll.u32 [#allocation9], 4
          %s252 = int_to_ptr.vmem [resolvable:$true] %s251
          %257 = dma.hbm_to_vmem [thread:$0]  %s4, 1024, %s252, [#allocation10], 64, 64, 4
        $region28: #{tpu_custom_call.1} parent=11 // pred_fallthru
          _
        // Predicated region
        $region29: #{tpu_custom_call.1} parent=11 // pred_check
          %p258 = pneg %p154
        $region30: #{tpu_custom_call.1} parent=11 // pred_check_branch
          %260 = sbr.rel (%p258) target = $region32
        $region31: #{tpu_custom_call.1} parent=11 // pred_region
          %s262 = ssub.s32 1024, 1024
          %263 = vsyncadd [#allocation10], %s262
          %s264 = sshll.u32 [#allocation11], 4
          %s265 = int_to_ptr.vmem [resolvable:$true] %s264
          %270 = dma.hbm_to_vmem [thread:$0]  %s5, 1024, %s265, [#allocation10], 64, 64, 4
        $region32: #{tpu_custom_call.1} parent=11 // pred_fallthru
          _
        // Predicated region
        $region33: #{tpu_custom_call.1} parent=11 // pred_check
          %p271 = pneg %p175
        $region34: #{tpu_custom_call.1} parent=11 // pred_check_branch
          %273 = sbr.rel (%p271) target = $region36
        $region35: #{tpu_custom_call.1} parent=11 // pred_region
          %s275 = ssub.s32 256, 256
          %276 = vsyncadd [#allocation13], %s275
          %s277 = sshll.u32 [#allocation12], 4
          %s278 = int_to_ptr.vmem [resolvable:$true] %s277
          %283 = dma.hbm_to_vmem [thread:$0]  %s6, 256, %s278, [#allocation13], 128, 128, 8
        $region36: #{tpu_custom_call.1} parent=11 // pred_fallthru
          _
      $region12: #{tpu_custom_call.1} parent=5 // pred_fallthru
        _
      %p284 = scmp.lt.s32.totalorder %s23, 2
      // Predicated region
      $region37: #{tpu_custom_call.1} parent=5 // pred_check
        %p285 = pneg %p284
      $region38: #{tpu_custom_call.1} parent=5 // pred_check_branch
        %287 = sbr.rel (%p285) target = $region40
      $region39: #{tpu_custom_call.1} parent=5 // pred_region
        // Predicated region
        $region41: #{tpu_custom_call.1} parent=39 // pred_check
          %p288 = pneg %p64
        $region42: #{tpu_custom_call.1} parent=39 // pred_check_branch
          %290 = sbr.rel (%p288) target = $region44
        $region43: #{tpu_custom_call.1} parent=39 // pred_region
          %s291 = sand.u32 %s54, 1
          %s292 = scalar_lea.sflag [#allocation4], %s291
          %s293 = sand.u32 %s54, 1
          %s294 = smul.addr %s293, 16
          %s295 = scalar_lea.vmem [#allocation3], %s294
          %s296 = smul.u32 4, %s23
          %s298 = ssub.s32 256, 256
          %299 = vsyncadd %s292, %s298
          %s300 = smul.addr %s296, 64
          %s301 = scalar_lea.hbm %s1, %s300
          %s302 = sshll.u32 %s295, 4
          %s303 = int_to_ptr.vmem [resolvable:$true] %s302
          %308 = dma.hbm_to_vmem [thread:$0]  %s301, 256, %s303, %s292, 64, 64, 4
        $region44: #{tpu_custom_call.1} parent=39 // pred_fallthru
          _
      $region40: #{tpu_custom_call.1} parent=5 // pred_fallthru
        _
      %p309 = scmp.le.s32.totalorder 1, %s23
      %p310 = scmp.lt.s32.totalorder %s23, 3
      %p311 = pnand %p309, %p310
      %p312 = pneg %p311
      // Predicated region
      $region45: #{tpu_custom_call.1} parent=5 // pred_check
        _
      $region46: #{tpu_custom_call.1} parent=5 // pred_check_branch
        %314 = sbr.rel (%p311) target = $region48
      $region47: #{tpu_custom_call.1} parent=5 // pred_region
        %s315 = ssub.s32 %s23, 1
        %s316 = sand.u32 %s57, 1
        %s317 = scalar_lea.sflag [#allocation4], %s316
        %s318 = sand.u32 %s57, 1
        %s319 = smul.addr %s318, 16
        %s320 = scalar_lea.vmem [#allocation3], %s319
        // Predicated region
        $region49: #{tpu_custom_call.1} parent=47 // pred_check
          %p321 = pneg %p70
        $region50: #{tpu_custom_call.1} parent=47 // pred_check_branch
          %323 = sbr.rel (%p321) target = $region52
        $region51: #{tpu_custom_call.1} parent=47 // pred_region
          %324 = dma.done %s317, 256
        $region52: #{tpu_custom_call.1} parent=47 // pred_fallthru
          _
        // Predicated region
        $region53: #{tpu_custom_call.1} parent=47 // pred_check
          %p325 = pneg %p91
        $region54: #{tpu_custom_call.1} parent=47 // pred_check_branch
          %327 = sbr.rel (%p325) target = $region56
        $region55: #{tpu_custom_call.1} parent=47 // pred_region
          %328 = dma.done [#allocation7], 1024
        $region56: #{tpu_custom_call.1} parent=47 // pred_fallthru
          _
        // Predicated region
        $region57: #{tpu_custom_call.1} parent=47 // pred_check
          %p329 = pneg %p112
        $region58: #{tpu_custom_call.1} parent=47 // pred_check_branch
          %331 = sbr.rel (%p329) target = $region60
        $region59: #{tpu_custom_call.1} parent=47 // pred_region
          %332 = dma.done [#allocation7], 1024
        $region60: #{tpu_custom_call.1} parent=47 // pred_fallthru
          _
        // Predicated region
        $region61: #{tpu_custom_call.1} parent=47 // pred_check
          %p333 = pneg %p133
        $region62: #{tpu_custom_call.1} parent=47 // pred_check_branch
          %335 = sbr.rel (%p333) target = $region64
        $region63: #{tpu_custom_call.1} parent=47 // pred_region
          %336 = dma.done [#allocation10], 1024
        $region64: #{tpu_custom_call.1} parent=47 // pred_fallthru
          _
        // Predicated region
        $region65: #{tpu_custom_call.1} parent=47 // pred_check
          %p337 = pneg %p154
        $region66: #{tpu_custom_call.1} parent=47 // pred_check_branch
          %339 = sbr.rel (%p337) target = $region68
        $region67: #{tpu_custom_call.1} parent=47 // pred_region
          %340 = dma.done [#allocation10], 1024
        $region68: #{tpu_custom_call.1} parent=47 // pred_fallthru
          _
        // Predicated region
        $region69: #{tpu_custom_call.1} parent=47 // pred_check
          %p341 = pneg %p175
        $region70: #{tpu_custom_call.1} parent=47 // pred_check_branch
          %343 = sbr.rel (%p341) target = $region72
        $region71: #{tpu_custom_call.1} parent=47 // pred_region
          %344 = dma.done [#allocation13], 256
        $region72: #{tpu_custom_call.1} parent=47 // pred_fallthru
          _
        %p345 = pneg %p44
        %p346 = pneg %p41
        %s347 = sand.u32 %s57, 1
        %s348 = scalar_lea.sflag [#allocation4], %s347
        %s349 = sand.u32 %s57, 1
        %s350 = smul.addr %s349, 16
        %s351 = scalar_lea.vmem [#allocation3], %s350
        %p352 = pneg %p70
        %p353 = pneg %p67
        %p354 = pneg %p91
        %p355 = pneg %p88
        %p356 = pneg %p112
        %p357 = pneg %p109
        %p358 = pneg %p133
        %p359 = pneg %p130
        %p360 = pneg %p154
        %p361 = pneg %p151
        %p362 = pneg %p175
        %p363 = pneg %p172
        %p364 = pneg %p201
        %p365 = pneg %p198
        %s366 = sand.u32 %s188, 1
        %s367 = scalar_lea.sflag [#allocation5], %s366
        %s368 = sand.u32 %s188, 1
        %s369 = smul.addr %s368, 32
        %s370 = scalar_lea.vmem [#allocation14], %s369
        %s371 = smul.u32 4, %s28
        %s372 = smul.u32 4, %s28
        %s374 = sld [smem:[#allocation2]]
        %v375 = vld [vmem:[%s320] sm:$0xf]
        %v376 = vld [vmem:[%s320 + $0x4] sm:$0xf]
        %v377 = vld [vmem:[%s320 + $0x8] sm:$0xf]
        %v378 = vld [vmem:[%s320 + $0xc] sm:$0xf]
        %v379 = vld [vmem:[#allocation6] sm:$0xf]
        %v380 = vld [vmem:[#allocation6 + $0x4] sm:$0xf]
        %v381 = vld [vmem:[#allocation6 + $0x8] sm:$0xf]
        %v382 = vld [vmem:[#allocation6 + $0xc] sm:$0xf]
        %v383 = vld [vmem:[#allocation6 + $0x10] sm:$0xf]
        %v384 = vld [vmem:[#allocation6 + $0x14] sm:$0xf]
        %v385 = vld [vmem:[#allocation6 + $0x18] sm:$0xf]
        %v386 = vld [vmem:[#allocation6 + $0x1c] sm:$0xf]
        %v387 = vld [vmem:[#allocation6 + $0x20] sm:$0xf]
        %v388 = vld [vmem:[#allocation6 + $0x24] sm:$0xf]
        %v389 = vld [vmem:[#allocation6 + $0x28] sm:$0xf]
        %v390 = vld [vmem:[#allocation6 + $0x2c] sm:$0xf]
        %v391 = vld [vmem:[#allocation6 + $0x30] sm:$0xf]
        %v392 = vld [vmem:[#allocation6 + $0x34] sm:$0xf]
        %v393 = vld [vmem:[#allocation6 + $0x38] sm:$0xf]
        %v394 = vld [vmem:[#allocation6 + $0x3c] sm:$0xf]
        %v395 = vld [vmem:[#allocation12] sm:$0x1]
        %v396 = vlaneseq
        %v397 = vshrl.u32 %v396, 7
        %v398 = vsub.s32 0, %v397
        %v399 = vrot.slane %v395, %v398
        %v404 = vunpack.c.l.b16 %v375
        %v405 = vunpack.c.l.b16 %v376
        %v406 = vunpack.c.l.b16 %v377
        %v407 = vunpack.c.l.b16 %v378
        %v408 = vpack.c.b16 %v405, %v404
        %v409 = vpack.c.b16 %v407, %v406
        %v428 = vunpack.c.l.b16 %v379
        %v429 = vunpack.c.l.b16 %v380
        %v430 = vunpack.c.l.b16 %v381
        %v431 = vunpack.c.l.b16 %v382
        %v432 = vunpack.c.l.b16 %v383
        %v433 = vunpack.c.l.b16 %v384
        %v434 = vunpack.c.l.b16 %v385
        %v435 = vunpack.c.l.b16 %v386
        %v436 = vunpack.c.l.b16 %v387
        %v437 = vunpack.c.l.b16 %v388
        %v438 = vunpack.c.l.b16 %v389
        %v439 = vunpack.c.l.b16 %v390
        %v440 = vunpack.c.l.b16 %v391
        %v441 = vunpack.c.l.b16 %v392
        %v442 = vunpack.c.l.b16 %v393
        %v443 = vunpack.c.l.b16 %v394
        %v444 = vpack.c.b16 %v429, %v428
        %v445 = vpack.c.b16 %v431, %v430
        %v446 = vpack.c.b16 %v433, %v432
        %v447 = vpack.c.b16 %v435, %v434
        %v448 = vpack.c.b16 %v437, %v436
        %v449 = vpack.c.b16 %v439, %v438
        %v450 = vpack.c.b16 %v441, %v440
        %v451 = vpack.c.b16 %v443, %v442
        %460 = vmatprep.subr.bf16.mxu0 0
        %461 = vmatpush1.bf16.msra.mxu0 %v451
        %462 = vmatprep.subr.bf16.mxu0 0
        %463 = vmatpush1.bf16.msra.mxu0 %v450
        %464 = vmatprep.subr.bf16.mxu0 0
        %465 = vmatpush1.bf16.msra.mxu0 %v449
        %466 = vmatprep.subr.bf16.mxu0 0
        %467 = vmatpush1.bf16.msra.mxu0 %v448
        %468 = vmatprep.subr.bf16.mxu0 0
        %469 = vmatpush1.bf16.msra.mxu0 %v447
        %470 = vmatprep.subr.bf16.mxu0 0
        %471 = vmatpush1.bf16.msra.mxu0 %v446
        %472 = vmatprep.subr.bf16.mxu0 0
        %473 = vmatpush1.bf16.msra.mxu0 %v445
        %474 = vmatprep.subr.bf16.mxu0 0
        %475 = vmatpush1.bf16.msra.mxu0 %v444
        %476 = vmatprep.subr.bf16.mxu0 0
        %477 = vmatpush2.bf16.msra.mxu0 0
        %478 = vmatprep.subr.bf16.mxu0 0
        %479 = vmatpush2.bf16.msra.mxu0 0
        %480 = vmatprep.subr.bf16.mxu0 0
        %481 = vmatpush2.bf16.msra.mxu0 0
        %482 = vmatprep.subr.bf16.mxu0 0
        %483 = vmatpush2.bf16.msra.mxu0 0
        %484 = vmatprep.subr.bf16.mxu0 0
        %485 = vmatpush2.bf16.msra.mxu0 0
        %486 = vmatprep.subr.bf16.mxu0 0
        %487 = vmatpush2.bf16.msra.mxu0 0
        %488 = vmatprep.subr.bf16.mxu0 0
        %489 = vmatpush2.bf16.msra.mxu0 0
        %490 = vmatprep.subr.bf16.mxu0 0
        %491 = vmatpush2.bf16.msra.mxu0 0
        %492 = vmatprep.mubr.bf16.mxu0 0
        %493 = vmatmul.mubr.bf16.gmra.mxu0 %v408
        %v494 = vpop.f32.mrf.mxu0
        %v495 = vadd.f32 %v399, %v494
        %v496 = vpop.f32.mrf.mxu0
        %v497 = vpop.f32.mrf.mxu0
        %v498 = vadd.f32 %v399, %v497
        %v499 = vpop.f32.mrf.mxu0
        %500 = vmatprep.mubr.bf16.mxu0 0
        %501 = vmatmul.mubr.bf16.gmra.mxu0 %v409
        %v502 = vpop.f32.mrf.mxu0
        %v503 = vadd.f32 %v399, %v502
        %v504 = vpop.f32.mrf.mxu0
        %v505 = vpop.f32.mrf.mxu0
        %v506 = vadd.f32 %v399, %v505
        %v507 = vpop.f32.mrf.mxu0
        %508 = vdwg.mxu0
        %509 = vadd.xlane.f32.xlu0 %v495
        %v510 = vpop.xlane.xlu0 %509
        %511 = vadd.xlane.f32.xlu0 %v498
        %v512 = vpop.xlane.xlu0 %511
        %513 = vadd.xlane.f32.xlu0 %v503
        %v514 = vpop.xlane.xlu0 %513
        %515 = vadd.xlane.f32.xlu0 %v506
        %v516 = vpop.xlane.xlu0 %515
        %v517 = vmul.f32 %v510, 0.015625
        %v518 = vmul.f32 %v512, 0.015625
        %v519 = vmul.f32 %v514, 0.015625
        %v520 = vmul.f32 %v516, 0.015625
        %v521 = vmul.f32 %v495, %v495
        %v522 = vmul.f32 %v498, %v498
        %v523 = vmul.f32 %v503, %v503
        %v524 = vmul.f32 %v506, %v506
        %525 = vadd.xlane.f32.xlu0 %v521
        %v526 = vpop.xlane.xlu0 %525
        %527 = vadd.xlane.f32.xlu0 %v522
        %v528 = vpop.xlane.xlu0 %527
        %529 = vadd.xlane.f32.xlu0 %v523
        %v530 = vpop.xlane.xlu0 %529
        %531 = vadd.xlane.f32.xlu0 %v524
        %v532 = vpop.xlane.xlu0 %531
        %v533 = vmul.f32 %v526, 0.015625
        %v534 = vmul.f32 %v528, 0.015625
        %v535 = vmul.f32 %v530, 0.015625
        %v536 = vmul.f32 %v532, 0.015625
        %v537 = vmul.f32 %v517, %v517
        %v538 = vmul.f32 %v518, %v518
        %v539 = vmul.f32 %v519, %v519
        %v540 = vmul.f32 %v520, %v520
        %v541 = vsub.f32 %v533, %v537
        %v542 = vsub.f32 %v534, %v538
        %v543 = vsub.f32 %v535, %v539
        %v544 = vsub.f32 %v536, %v540
        %v545 = vsub.f32 %v495, %v517
        %v546 = vsub.f32 %v498, %v518
        %v547 = vsub.f32 %v503, %v519
        %v548 = vsub.f32 %v506, %v520
        %v549 = vadd.f32 %v541, 1e-05
        %v550 = vadd.f32 %v542, 1e-05
        %v551 = vadd.f32 %v543, 1e-05
        %v552 = vadd.f32 %v544, 1e-05
        %v553 = vrsqrt.pop %v549
        %v554 = vrsqrt.pop %v550
        %v555 = vrsqrt.pop %v551
        %v556 = vrsqrt.pop %v552
        %v557 = vmul.f32 %v545, %v553
        %v558 = vmul.f32 %v546, %v554
        %v559 = vmul.f32 %v547, %v555
        %v560 = vmul.f32 %v548, %v556
        %v561 = vld [vmem:[#allocation12 + $0x1] sm:$0x1]
        %v562 = vlaneseq
        %v563 = vshrl.u32 %v562, 7
        %v564 = vsub.s32 0, %v563
        %v565 = vrot.slane %v561, %v564
        %v566 = vmul.f32 %v557, %v565
        %v567 = vmul.f32 %v558, %v565
        %v568 = vmul.f32 %v559, %v565
        %v569 = vmul.f32 %v560, %v565
        %v570 = vld [vmem:[#allocation12 + $0x2] sm:$0x1]
        %v571 = vlaneseq
        %v572 = vshrl.u32 %v571, 7
        %v573 = vsub.s32 0, %v572
        %v574 = vrot.slane %v570, %v573
        %v575 = vadd.f32 %v566, %v574
        %v576 = vadd.f32 %v567, %v574
        %v577 = vadd.f32 %v568, %v574
        %v578 = vadd.f32 %v569, %v574
        %v579 = vmax.f32 %v575, 0.0
        %v580 = vmax.f32 %v576, 0.0
        %v581 = vmax.f32 %v577, 0.0
        %v582 = vmax.f32 %v578, 0.0
        %v583 = vpack.c.bf16 %v580, %v579
        %v584 = vpack.c.bf16 %v582, %v581
        %v585 = vld [vmem:[#allocation8] sm:$0xf]
        %v586 = vld [vmem:[#allocation8 + $0x4] sm:$0xf]
        %v587 = vld [vmem:[#allocation8 + $0x8] sm:$0xf]
        %v588 = vld [vmem:[#allocation8 + $0xc] sm:$0xf]
        %v589 = vld [vmem:[#allocation8 + $0x10] sm:$0xf]
        %v590 = vld [vmem:[#allocation8 + $0x14] sm:$0xf]
        %v591 = vld [vmem:[#allocation8 + $0x18] sm:$0xf]
        %v592 = vld [vmem:[#allocation8 + $0x1c] sm:$0xf]
        %v593 = vld [vmem:[#allocation8 + $0x20] sm:$0xf]
        %v594 = vld [vmem:[#allocation8 + $0x24] sm:$0xf]
        %v595 = vld [vmem:[#allocation8 + $0x28] sm:$0xf]
        %v596 = vld [vmem:[#allocation8 + $0x2c] sm:$0xf]
        %v597 = vld [vmem:[#allocation8 + $0x30] sm:$0xf]
        %v598 = vld [vmem:[#allocation8 + $0x34] sm:$0xf]
        %v599 = vld [vmem:[#allocation8 + $0x38] sm:$0xf]
        %v600 = vld [vmem:[#allocation8 + $0x3c] sm:$0xf]
        %v601 = vld [vmem:[#allocation12 + $0x3] sm:$0x1]
        %v602 = vlaneseq
        %v603 = vshrl.u32 %v602, 7
        %v604 = vsub.s32 0, %v603
        %v605 = vrot.slane %v601, %v604
        %v622 = vunpack.c.l.b16 %v585
        %v623 = vunpack.c.l.b16 %v586
        %v624 = vunpack.c.l.b16 %v587
        %v625 = vunpack.c.l.b16 %v588
        %v626 = vunpack.c.l.b16 %v589
        %v627 = vunpack.c.l.b16 %v590
        %v628 = vunpack.c.l.b16 %v591
        %v629 = vunpack.c.l.b16 %v592
        %v630 = vunpack.c.l.b16 %v593
        %v631 = vunpack.c.l.b16 %v594
        %v632 = vunpack.c.l.b16 %v595
        %v633 = vunpack.c.l.b16 %v596
        %v634 = vunpack.c.l.b16 %v597
        %v635 = vunpack.c.l.b16 %v598
        %v636 = vunpack.c.l.b16 %v599
        %v637 = vunpack.c.l.b16 %v600
        %v638 = vpack.c.b16 %v623, %v622
        %v639 = vpack.c.b16 %v625, %v624
        %v640 = vpack.c.b16 %v627, %v626
        %v641 = vpack.c.b16 %v629, %v628
        %v642 = vpack.c.b16 %v631, %v630
        %v643 = vpack.c.b16 %v633, %v632
        %v644 = vpack.c.b16 %v635, %v634
        %v645 = vpack.c.b16 %v637, %v636
        %654 = vmatprep.subr.bf16.mxu0 0
        %655 = vmatpush1.bf16.msra.mxu0 %v645
        %656 = vmatprep.subr.bf16.mxu0 0
        %657 = vmatpush1.bf16.msra.mxu0 %v644
        %658 = vmatprep.subr.bf16.mxu0 0
        %659 = vmatpush1.bf16.msra.mxu0 %v643
        %660 = vmatprep.subr.bf16.mxu0 0
        %661 = vmatpush1.bf16.msra.mxu0 %v642
        %662 = vmatprep.subr.bf16.mxu0 0
        %663 = vmatpush1.bf16.msra.mxu0 %v641
        %664 = vmatprep.subr.bf16.mxu0 0
        %665 = vmatpush1.bf16.msra.mxu0 %v640
        %666 = vmatprep.subr.bf16.mxu0 0
        %667 = vmatpush1.bf16.msra.mxu0 %v639
        %668 = vmatprep.subr.bf16.mxu0 0
        %669 = vmatpush1.bf16.msra.mxu0 %v638
        %670 = vmatprep.subr.bf16.mxu0 0
        %671 = vmatpush2.bf16.msra.mxu0 0
        %672 = vmatprep.subr.bf16.mxu0 0
        %673 = vmatpush2.bf16.msra.mxu0 0
        %674 = vmatprep.subr.bf16.mxu0 0
        %675 = vmatpush2.bf16.msra.mxu0 0
        %676 = vmatprep.subr.bf16.mxu0 0
        %677 = vmatpush2.bf16.msra.mxu0 0
        %678 = vmatprep.subr.bf16.mxu0 0
        %679 = vmatpush2.bf16.msra.mxu0 0
        %680 = vmatprep.subr.bf16.mxu0 0
        %681 = vmatpush2.bf16.msra.mxu0 0
        %682 = vmatprep.subr.bf16.mxu0 0
        %683 = vmatpush2.bf16.msra.mxu0 0
        %684 = vmatprep.subr.bf16.mxu0 0
        %685 = vmatpush2.bf16.msra.mxu0 0
        %686 = vmatprep.mubr.bf16.mxu0 0
        %687 = vmatmul.mubr.bf16.gmra.mxu0 %v583
        %v688 = vpop.f32.mrf.mxu0
        %v689 = vadd.f32 %v605, %v688
        %v690 = vpop.f32.mrf.mxu0
        %v691 = vpop.f32.mrf.mxu0
        %v692 = vadd.f32 %v605, %v691
        %v693 = vpop.f32.mrf.mxu0
        %694 = vmatprep.mubr.bf16.mxu0 0
        %695 = vmatmul.mubr.bf16.gmra.mxu0 %v584
        %v696 = vpop.f32.mrf.mxu0
        %v697 = vadd.f32 %v605, %v696
        %v698 = vpop.f32.mrf.mxu0
        %v699 = vpop.f32.mrf.mxu0
        %v700 = vadd.f32 %v605, %v699
        %v701 = vpop.f32.mrf.mxu0
        %702 = vdwg.mxu0
        %703 = vadd.xlane.f32.xlu0 %v689
        %v704 = vpop.xlane.xlu0 %703
        %705 = vadd.xlane.f32.xlu0 %v692
        %v706 = vpop.xlane.xlu0 %705
        %707 = vadd.xlane.f32.xlu0 %v697
        %v708 = vpop.xlane.xlu0 %707
        %709 = vadd.xlane.f32.xlu0 %v700
        %v710 = vpop.xlane.xlu0 %709
        %v711 = vmul.f32 %v704, 0.015625
        %v712 = vmul.f32 %v706, 0.015625
        %v713 = vmul.f32 %v708, 0.015625
        %v714 = vmul.f32 %v710, 0.015625
        %v715 = vmul.f32 %v689, %v689
        %v716 = vmul.f32 %v692, %v692
        %v717 = vmul.f32 %v697, %v697
        %v718 = vmul.f32 %v700, %v700
        %719 = vadd.xlane.f32.xlu0 %v715
        %v720 = vpop.xlane.xlu0 %719
        %721 = vadd.xlane.f32.xlu0 %v716
        %v722 = vpop.xlane.xlu0 %721
        %723 = vadd.xlane.f32.xlu0 %v717
        %v724 = vpop.xlane.xlu0 %723
        %725 = vadd.xlane.f32.xlu0 %v718
        %v726 = vpop.xlane.xlu0 %725
        %v727 = vmul.f32 %v720, 0.015625
        %v728 = vmul.f32 %v722, 0.015625
        %v729 = vmul.f32 %v724, 0.015625
        %v730 = vmul.f32 %v726, 0.015625
        %v731 = vmul.f32 %v711, %v711
        %v732 = vmul.f32 %v712, %v712
        %v733 = vmul.f32 %v713, %v713
        %v734 = vmul.f32 %v714, %v714
        %v735 = vsub.f32 %v727, %v731
        %v736 = vsub.f32 %v728, %v732
        %v737 = vsub.f32 %v729, %v733
        %v738 = vsub.f32 %v730, %v734
        %v739 = vsub.f32 %v689, %v711
        %v740 = vsub.f32 %v692, %v712
        %v741 = vsub.f32 %v697, %v713
        %v742 = vsub.f32 %v700, %v714
        %v743 = vadd.f32 %v735, 1e-05
        %v744 = vadd.f32 %v736, 1e-05
        %v745 = vadd.f32 %v737, 1e-05
        %v746 = vadd.f32 %v738, 1e-05
        %v747 = vrsqrt.pop %v743
        %v748 = vrsqrt.pop %v744
        %v749 = vrsqrt.pop %v745
        %v750 = vrsqrt.pop %v746
        %v751 = vmul.f32 %v739, %v747
        %v752 = vmul.f32 %v740, %v748
        %v753 = vmul.f32 %v741, %v749
        %v754 = vmul.f32 %v742, %v750
        %v755 = vld [vmem:[#allocation12 + $0x4] sm:$0x1]
        %v756 = vlaneseq
        %v757 = vshrl.u32 %v756, 7
        %v758 = vsub.s32 0, %v757
        %v759 = vrot.slane %v755, %v758
        %v760 = vmul.f32 %v751, %v759
        %v761 = vmul.f32 %v752, %v759
        %v762 = vmul.f32 %v753, %v759
        %v763 = vmul.f32 %v754, %v759
        %v764 = vld [vmem:[#allocation12 + $0x5] sm:$0x1]
        %v765 = vlaneseq
        %v766 = vshrl.u32 %v765, 7
        %v767 = vsub.s32 0, %v766
        %v768 = vrot.slane %v764, %v767
        %v769 = vadd.f32 %v760, %v768
        %v770 = vadd.f32 %v761, %v768
        %v771 = vadd.f32 %v762, %v768
        %v772 = vadd.f32 %v763, %v768
        %v773 = vmax.f32 %v769, 0.0
        %v774 = vmax.f32 %v770, 0.0
        %v775 = vmax.f32 %v771, 0.0
        %v776 = vmax.f32 %v772, 0.0
        %v777 = vpack.c.bf16 %v774, %v773
        %v778 = vpack.c.bf16 %v776, %v775
        %v779 = vld [vmem:[#allocation9] sm:$0xf]
        %v780 = vld [vmem:[#allocation9 + $0x4] sm:$0xf]
        %v781 = vld [vmem:[#allocation9 + $0x8] sm:$0xf]
        %v782 = vld [vmem:[#allocation9 + $0xc] sm:$0xf]
        %v783 = vld [vmem:[#allocation9 + $0x10] sm:$0xf]
        %v784 = vld [vmem:[#allocation9 + $0x14] sm:$0xf]
        %v785 = vld [vmem:[#allocation9 + $0x18] sm:$0xf]
        %v786 = vld [vmem:[#allocation9 + $0x1c] sm:$0xf]
        %v787 = vld [vmem:[#allocation9 + $0x20] sm:$0xf]
        %v788 = vld [vmem:[#allocation9 + $0x24] sm:$0xf]
        %v789 = vld [vmem:[#allocation9 + $0x28] sm:$0xf]
        %v790 = vld [vmem:[#allocation9 + $0x2c] sm:$0xf]
        %v791 = vld [vmem:[#allocation9 + $0x30] sm:$0xf]
        %v792 = vld [vmem:[#allocation9 + $0x34] sm:$0xf]
        %v793 = vld [vmem:[#allocation9 + $0x38] sm:$0xf]
        %v794 = vld [vmem:[#allocation9 + $0x3c] sm:$0xf]
        %v795 = vld [vmem:[#allocation12 + $0x6] sm:$0x1]
        %v796 = vlaneseq
        %v797 = vshrl.u32 %v796, 7
        %v798 = vsub.s32 0, %v797
        %v799 = vrot.slane %v795, %v798
        %v816 = vunpack.c.l.b16 %v779
        %v817 = vunpack.c.l.b16 %v780
        %v818 = vunpack.c.l.b16 %v781
        %v819 = vunpack.c.l.b16 %v782
        %v820 = vunpack.c.l.b16 %v783
        %v821 = vunpack.c.l.b16 %v784
        %v822 = vunpack.c.l.b16 %v785
        %v823 = vunpack.c.l.b16 %v786
        %v824 = vunpack.c.l.b16 %v787
        %v825 = vunpack.c.l.b16 %v788
        %v826 = vunpack.c.l.b16 %v789
        %v827 = vunpack.c.l.b16 %v790
        %v828 = vunpack.c.l.b16 %v791
        %v829 = vunpack.c.l.b16 %v792
        %v830 = vunpack.c.l.b16 %v793
        %v831 = vunpack.c.l.b16 %v794
        %v832 = vpack.c.b16 %v817, %v816
        %v833 = vpack.c.b16 %v819, %v818
        %v834 = vpack.c.b16 %v821, %v820
        %v835 = vpack.c.b16 %v823, %v822
        %v836 = vpack.c.b16 %v825, %v824
        %v837 = vpack.c.b16 %v827, %v826
        %v838 = vpack.c.b16 %v829, %v828
        %v839 = vpack.c.b16 %v831, %v830
        %848 = vmatprep.subr.bf16.mxu0 0
        %849 = vmatpush1.bf16.msra.mxu0 %v839
        %850 = vmatprep.subr.bf16.mxu0 0
        %851 = vmatpush1.bf16.msra.mxu0 %v838
        %852 = vmatprep.subr.bf16.mxu0 0
        %853 = vmatpush1.bf16.msra.mxu0 %v837
        %854 = vmatprep.subr.bf16.mxu0 0
        %855 = vmatpush1.bf16.msra.mxu0 %v836
        %856 = vmatprep.subr.bf16.mxu0 0
        %857 = vmatpush1.bf16.msra.mxu0 %v835
        %858 = vmatprep.subr.bf16.mxu0 0
        %859 = vmatpush1.bf16.msra.mxu0 %v834
        %860 = vmatprep.subr.bf16.mxu0 0
        %861 = vmatpush1.bf16.msra.mxu0 %v833
        %862 = vmatprep.subr.bf16.mxu0 0
        %863 = vmatpush1.bf16.msra.mxu0 %v832
        %864 = vmatprep.subr.bf16.mxu0 0
        %865 = vmatpush2.bf16.msra.mxu0 0
        %866 = vmatprep.subr.bf16.mxu0 0
        %867 = vmatpush2.bf16.msra.mxu0 0
        %868 = vmatprep.subr.bf16.mxu0 0
        %869 = vmatpush2.bf16.msra.mxu0 0
        %870 = vmatprep.subr.bf16.mxu0 0
        %871 = vmatpush2.bf16.msra.mxu0 0
        %872 = vmatprep.subr.bf16.mxu0 0
        %873 = vmatpush2.bf16.msra.mxu0 0
        %874 = vmatprep.subr.bf16.mxu0 0
        %875 = vmatpush2.bf16.msra.mxu0 0
        %876 = vmatprep.subr.bf16.mxu0 0
        %877 = vmatpush2.bf16.msra.mxu0 0
        %878 = vmatprep.subr.bf16.mxu0 0
        %879 = vmatpush2.bf16.msra.mxu0 0
        %880 = vmatprep.mubr.bf16.mxu0 0
        %881 = vmatmul.mubr.bf16.gmra.mxu0 %v777
        %v882 = vpop.f32.mrf.mxu0
        %v883 = vadd.f32 %v799, %v882
        %v884 = vpop.f32.mrf.mxu0
        %v885 = vpop.f32.mrf.mxu0
        %v886 = vadd.f32 %v799, %v885
        %v887 = vpop.f32.mrf.mxu0
        %888 = vmatprep.mubr.bf16.mxu0 0
        %889 = vmatmul.mubr.bf16.gmra.mxu0 %v778
        %v890 = vpop.f32.mrf.mxu0
        %v891 = vadd.f32 %v799, %v890
        %v892 = vpop.f32.mrf.mxu0
        %v893 = vpop.f32.mrf.mxu0
        %v894 = vadd.f32 %v799, %v893
        %v895 = vpop.f32.mrf.mxu0
        %896 = vdwg.mxu0
        %897 = vadd.xlane.f32.xlu0 %v883
        %v898 = vpop.xlane.xlu0 %897
        %899 = vadd.xlane.f32.xlu0 %v886
        %v900 = vpop.xlane.xlu0 %899
        %901 = vadd.xlane.f32.xlu0 %v891
        %v902 = vpop.xlane.xlu0 %901
        %903 = vadd.xlane.f32.xlu0 %v894
        %v904 = vpop.xlane.xlu0 %903
        %v905 = vmul.f32 %v898, 0.03125
        %v906 = vmul.f32 %v900, 0.03125
        %v907 = vmul.f32 %v902, 0.03125
        %v908 = vmul.f32 %v904, 0.03125
        %v909 = vmul.f32 %v883, %v883
        %v910 = vmul.f32 %v886, %v886
        %v911 = vmul.f32 %v891, %v891
        %v912 = vmul.f32 %v894, %v894
        %913 = vadd.xlane.f32.xlu0 %v909
        %v914 = vpop.xlane.xlu0 %913
        %915 = vadd.xlane.f32.xlu0 %v910
        %v916 = vpop.xlane.xlu0 %915
        %917 = vadd.xlane.f32.xlu0 %v911
        %v918 = vpop.xlane.xlu0 %917
        %919 = vadd.xlane.f32.xlu0 %v912
        %v920 = vpop.xlane.xlu0 %919
        %v921 = vmul.f32 %v914, 0.03125
        %v922 = vmul.f32 %v916, 0.03125
        %v923 = vmul.f32 %v918, 0.03125
        %v924 = vmul.f32 %v920, 0.03125
        %v925 = vmul.f32 %v905, %v905
        %v926 = vmul.f32 %v906, %v906
        %v927 = vmul.f32 %v907, %v907
        %v928 = vmul.f32 %v908, %v908
        %v929 = vsub.f32 %v921, %v925
        %v930 = vsub.f32 %v922, %v926
        %v931 = vsub.f32 %v923, %v927
        %v932 = vsub.f32 %v924, %v928
        %v933 = vsub.f32 %v883, %v905
        %v934 = vsub.f32 %v886, %v906
        %v935 = vsub.f32 %v891, %v907
        %v936 = vsub.f32 %v894, %v908
        %v937 = vadd.f32 %v929, 1e-05
        %v938 = vadd.f32 %v930, 1e-05
        %v939 = vadd.f32 %v931, 1e-05
        %v940 = vadd.f32 %v932, 1e-05
        %v941 = vrsqrt.pop %v937
        %v942 = vrsqrt.pop %v938
        %v943 = vrsqrt.pop %v939
        %v944 = vrsqrt.pop %v940
        %v945 = vmul.f32 %v933, %v941
        %v946 = vmul.f32 %v934, %v942
        %v947 = vmul.f32 %v935, %v943
        %v948 = vmul.f32 %v936, %v944
        %v949 = vld [vmem:[#allocation12 + $0x7] sm:$0x1]
        %v950 = vlaneseq
        %v951 = vshrl.u32 %v950, 7
        %v952 = vsub.s32 0, %v951
        %v953 = vrot.slane %v949, %v952
        %v954 = vmul.f32 %v945, %v953
        %v955 = vmul.f32 %v946, %v953
        %v956 = vmul.f32 %v947, %v953
        %v957 = vmul.f32 %v948, %v953
        %v958 = vld [vmem:[#allocation12 + $0x8] sm:$0x1]
        %v959 = vlaneseq
        %v960 = vshrl.u32 %v959, 7
        %v961 = vsub.s32 0, %v960
        %v962 = vrot.slane %v958, %v961
        %v963 = vadd.f32 %v954, %v962
        %v964 = vadd.f32 %v955, %v962
        %v965 = vadd.f32 %v956, %v962
        %v966 = vadd.f32 %v957, %v962
        %v967 = vpack.c.bf16 %v964, %v963
        %v968 = vpack.c.bf16 %v966, %v965
        %v969 = vld [vmem:[#allocation11] sm:$0xf]
        %v970 = vld [vmem:[#allocation11 + $0x4] sm:$0xf]
        %v971 = vld [vmem:[#allocation11 + $0x8] sm:$0xf]
        %v972 = vld [vmem:[#allocation11 + $0xc] sm:$0xf]
        %v973 = vld [vmem:[#allocation11 + $0x10] sm:$0xf]
        %v974 = vld [vmem:[#allocation11 + $0x14] sm:$0xf]
        %v975 = vld [vmem:[#allocation11 + $0x18] sm:$0xf]
        %v976 = vld [vmem:[#allocation11 + $0x1c] sm:$0xf]
        %v977 = vld [vmem:[#allocation11 + $0x20] sm:$0xf]
        %v978 = vld [vmem:[#allocation11 + $0x24] sm:$0xf]
        %v979 = vld [vmem:[#allocation11 + $0x28] sm:$0xf]
        %v980 = vld [vmem:[#allocation11 + $0x2c] sm:$0xf]
        %v981 = vld [vmem:[#allocation11 + $0x30] sm:$0xf]
        %v982 = vld [vmem:[#allocation11 + $0x34] sm:$0xf]
        %v983 = vld [vmem:[#allocation11 + $0x38] sm:$0xf]
        %v984 = vld [vmem:[#allocation11 + $0x3c] sm:$0xf]
        %v985 = vld [vmem:[#allocation12 + $0x9] sm:$0x1]
        %v986 = vlaneseq
        %v987 = vshrl.u32 %v986, 7
        %v988 = vsub.s32 0, %v987
        %v989 = vrot.slane %v985, %v988
        %v1006 = vunpack.c.l.b16 %v969
        %v1007 = vunpack.c.l.b16 %v970
        %v1008 = vunpack.c.l.b16 %v971
        %v1009 = vunpack.c.l.b16 %v972
        %v1010 = vunpack.c.l.b16 %v973
        %v1011 = vunpack.c.l.b16 %v974
        %v1012 = vunpack.c.l.b16 %v975
        %v1013 = vunpack.c.l.b16 %v976
        %v1014 = vunpack.c.l.b16 %v977
        %v1015 = vunpack.c.l.b16 %v978
        %v1016 = vunpack.c.l.b16 %v979
        %v1017 = vunpack.c.l.b16 %v980
        %v1018 = vunpack.c.l.b16 %v981
        %v1019 = vunpack.c.l.b16 %v982
        %v1020 = vunpack.c.l.b16 %v983
        %v1021 = vunpack.c.l.b16 %v984
        %v1022 = vpack.c.b16 %v1007, %v1006
        %v1023 = vpack.c.b16 %v1009, %v1008
        %v1024 = vpack.c.b16 %v1011, %v1010
        %v1025 = vpack.c.b16 %v1013, %v1012
        %v1026 = vpack.c.b16 %v1015, %v1014
        %v1027 = vpack.c.b16 %v1017, %v1016
        %v1028 = vpack.c.b16 %v1019, %v1018
        %v1029 = vpack.c.b16 %v1021, %v1020
        %1038 = vmatprep.subr.bf16.mxu0 0
        %1039 = vmatpush1.bf16.msra.mxu0 %v1029
        %1040 = vmatprep.subr.bf16.mxu0 0
        %1041 = vmatpush1.bf16.msra.mxu0 %v1028
        %1042 = vmatprep.subr.bf16.mxu0 0
        %1043 = vmatpush1.bf16.msra.mxu0 %v1027
        %1044 = vmatprep.subr.bf16.mxu0 0
        %1045 = vmatpush1.bf16.msra.mxu0 %v1026
        %1046 = vmatprep.subr.bf16.mxu0 0
        %1047 = vmatpush1.bf16.msra.mxu0 %v1025
        %1048 = vmatprep.subr.bf16.mxu0 0
        %1049 = vmatpush1.bf16.msra.mxu0 %v1024
        %1050 = vmatprep.subr.bf16.mxu0 0
        %1051 = vmatpush1.bf16.msra.mxu0 %v1023
        %1052 = vmatprep.subr.bf16.mxu0 0
        %1053 = vmatpush1.bf16.msra.mxu0 %v1022
        %1054 = vmatprep.subr.bf16.mxu0 0
        %1055 = vmatpush2.bf16.msra.mxu0 0
        %1056 = vmatprep.subr.bf16.mxu0 0
        %1057 = vmatpush2.bf16.msra.mxu0 0
        %1058 = vmatprep.subr.bf16.mxu0 0
        %1059 = vmatpush2.bf16.msra.mxu0 0
        %1060 = vmatprep.subr.bf16.mxu0 0
        %1061 = vmatpush2.bf16.msra.mxu0 0
        %1062 = vmatprep.subr.bf16.mxu0 0
        %1063 = vmatpush2.bf16.msra.mxu0 0
        %1064 = vmatprep.subr.bf16.mxu0 0
        %1065 = vmatpush2.bf16.msra.mxu0 0
        %1066 = vmatprep.subr.bf16.mxu0 0
        %1067 = vmatpush2.bf16.msra.mxu0 0
        %1068 = vmatprep.subr.bf16.mxu0 0
        %1069 = vmatpush2.bf16.msra.mxu0 0
        %1070 = vmatprep.mubr.bf16.mxu0 0
        %1071 = vmatmul.mubr.bf16.gmra.mxu0 %v967
        %v1072 = vpop.f32.mrf.mxu0
        %v1073 = vadd.f32 %v989, %v1072
        %v1074 = vpop.f32.mrf.mxu0
        %v1075 = vpop.f32.mrf.mxu0
        %v1076 = vadd.f32 %v989, %v1075
        %v1077 = vpop.f32.mrf.mxu0
        %1078 = vmatprep.mubr.bf16.mxu0 0
        %1079 = vmatmul.mubr.bf16.gmra.mxu0 %v968
        %v1080 = vpop.f32.mrf.mxu0
        %v1081 = vadd.f32 %v989, %v1080
        %v1082 = vpop.f32.mrf.mxu0
        %v1083 = vpop.f32.mrf.mxu0
        %v1084 = vadd.f32 %v989, %v1083
        %v1085 = vpop.f32.mrf.mxu0
        %1086 = vdwg.mxu0
        %v1087 = vtanh.pop %v1073
        %v1088 = vtanh.pop %v1076
        %v1089 = vtanh.pop %v1081
        %v1090 = vtanh.pop %v1084
        %v1091 = vstv %s374
        %v1092 = vmul.f32 %v1087, %v1091
        %v1093 = vmul.f32 %v1088, %v1091
        %v1094 = vmul.f32 %v1089, %v1091
        %v1095 = vmul.f32 %v1090, %v1091
        %1096 = vst [vmem:[%s370] sm:$0xff] %v1092
        %1097 = vst [vmem:[%s370 + $0x8] sm:$0xff] %v1093
        %1098 = vst [vmem:[%s370 + $0x10] sm:$0xff] %v1094
        %1099 = vst [vmem:[%s370 + $0x18] sm:$0xff] %v1095
        %s1100 = sand.u32 %s188, 1
        %s1101 = scalar_lea.sflag [#allocation5], %s1100
        %s1102 = sand.u32 %s188, 1
        %s1103 = smul.addr %s1102, 32
        %s1104 = scalar_lea.vmem [#allocation14], %s1103
        // Predicated region
        $region73: #{tpu_custom_call.1} parent=47 // pred_check
          %p1105 = pneg %p198
        $region74: #{tpu_custom_call.1} parent=47 // pred_check_branch
          %1107 = sbr.rel (%p1105) target = $region76
        $region75: #{tpu_custom_call.1} parent=47 // pred_region
          %s1108 = smul.u32 4, %s28
          %s1110 = ssub.s32 512, 512
          %1111 = vsyncadd %s1101, %s1110
          %s1112 = smul.addr %s1108, 128
          %s1113 = scalar_lea.hbm %s7, %s1112
          %s1114 = sshll.u32 %s1104, 4
          %s1115 = int_to_ptr.vmem [resolvable:$true] %s1114
          %1120 = dma.vmem_to_hbm [thread:$0]  %s1115, 512, %s1113, %s1101, 128, 128, 8
        $region76: #{tpu_custom_call.1} parent=47 // pred_fallthru
          _
      $region48: #{tpu_custom_call.1} parent=5 // pred_fallthru
        _
      %p1121 = scmp.le.s32.totalorder 2, %s23
      // Predicated region
      $region77: #{tpu_custom_call.1} parent=5 // pred_check
        %p1122 = pneg %p1121
      $region78: #{tpu_custom_call.1} parent=5 // pred_check_branch
        %1124 = sbr.rel (%p1122) target = $region80
      $region79: #{tpu_custom_call.1} parent=5 // pred_region
        %s1125 = ssub.s32 %s23, 2
        // Predicated region
        $region81: #{tpu_custom_call.1} parent=79 // pred_check
          %p1126 = pneg %p204
        $region82: #{tpu_custom_call.1} parent=79 // pred_check_branch
          %1128 = sbr.rel (%p1126) target = $region84
        $region83: #{tpu_custom_call.1} parent=79 // pred_region
          %s1129 = sand.u32 %s189, 1
          %s1130 = scalar_lea.sflag [#allocation5], %s1129
          %s1131 = sand.u32 %s189, 1
          %s1132 = smul.addr %s1131, 32
          %s1133 = scalar_lea.vmem [#allocation14], %s1132
          %1134 = dma.done %s1130, 512
        $region84: #{tpu_custom_call.1} parent=79 // pred_fallthru
          _
      $region80: #{tpu_custom_call.1} parent=5 // pred_fallthru
        _
    $region6: #{tpu_custom_call.1} parent=1 // loop_footer
      %s27 = sadd.s32 1, %s23
    $region7: #{tpu_custom_call.1} parent=1 // loop_footer_branch
      %22 = sbr.rel target = $region3
    $region8: #{tpu_custom_call.1} parent=1 // loop_exit
      _
    %1135 = vsyncpa [#allocation4], 1
    %s1136 = scalar_lea.sflag [#allocation4], 1
    %1137 = vsyncpa %s1136, 1
    %1138 = vsyncpa [#allocation7], 1
    %1139 = vsyncpa [#allocation10], 1
    %1140 = vsyncpa [#allocation13], 1
    %1141 = vsyncpa [#allocation5], 1
    %s1142 = scalar_lea.sflag [#allocation5], 1
    %1143 = vsyncpa %s1142, 1

// kernel: tpu_custom_call.1
$region0: #{tpu_custom_call.1}
  #allocation0 [shape = 'u32[]', space=smem, size = 0x4, offset = 0x4, fixed_abs, tag = 'smem constant byte address 0x4 - core index']
  #allocation1 [shape = 'u32[144,128]{1,0:T(1,128)}', space=vmem, size = 0x12000, scoped, tag = 'internal scratch']
  #allocation2 [shape = 'f32[1,1]{1,0:T(1,128)S(6)}', space=smem, size = 0x200, scoped, tag = 'scoped memory for tpu_custom_call.1']
  %s0 = inlined_call_operand.<no memory space> [shape: f32[1,1], index: 0, kind: input, shape index: {}]
  %s1 = inlined_call_operand.hbm [shape: bf16[64,128], index: 1, kind: input, shape index: {}]
  %s2 = inlined_call_operand.hbm [shape: bf16[128,128], index: 2, kind: input, shape index: {}]
  %s3 = inlined_call_operand.hbm [shape: bf16[128,128], index: 3, kind: input, shape index: {}]
  %s4 = inlined_call_operand.hbm [shape: bf16[128,128], index: 4, kind: input, shape index: {}]
  %s5 = inlined_call_operand.hbm [shape: bf16[128,128], index: 5, kind: input, shape index: {}]
  %s6 = inlined_call_operand.hbm [shape: f32[16,128], index: 6, kind: input, shape index: {}]
  %s7 = inlined_call_operand.hbm [shape: f32[64,128], index: 7, kind: output, shape index: {}]
  %s8 = sld [smem:[#allocation0]]
  $region85: #{tpu_custom_call.1} parent=0
    _
  %s10 = ssub.s32 1, %s8
  %s11 = scalar_select 0, %s10, %s8
  %12 = sst [smem:[#allocation2]] %s0
  $region1: #{tpu_custom_call.1} parent=0
    #allocation3 [shape = 'u8[16384]{0}', space=vmem, size = 0x4000, scoped, tag = 'input window, operand 1']
    #allocation4 [shape = 's32[2]{0}', space=sflag, size = 0x8, scoped, tag = 'scoped memory for tpu_custom_call.1']
    #allocation5 [shape = 's32[2]{0}', space=sflag, size = 0x8, scoped, tag = 'scoped memory for tpu_custom_call.1']
    #allocation6 [shape = 'u8[32768]{0}', space=vmem, size = 0x8000, scoped, tag = 'input window, operand 2, single buffered']
    #allocation7 [shape = 's32[1]{0}', space=sflag, size = 0x4, scoped, tag = 'scoped memory for tpu_custom_call.1']
    #allocation8 [shape = 'u8[32768]{0}', space=vmem, size = 0x8000, scoped, tag = 'input window, operand 3, single buffered']
    #allocation9 [shape = 'u8[32768]{0}', space=vmem, size = 0x8000, scoped, tag = 'input window, operand 4, single buffered']
    #allocation10 [shape = 's32[1]{0}', space=sflag, size = 0x4, scoped, tag = 'scoped memory for tpu_custom_call.1']
    #allocation11 [shape = 'u8[32768]{0}', space=vmem, size = 0x8000, scoped, tag = 'input window, operand 5, single buffered']
    #allocation12 [shape = 'u8[8192]{0}', space=vmem, size = 0x2000, scoped, tag = 'input window, operand 6, single buffered']
    #allocation13 [shape = 's32[1]{0}', space=sflag, size = 0x4, scoped, tag = 'scoped memory for tpu_custom_call.1']
    #allocation14 [shape = 'u8[32768]{0}', space=vmem, size = 0x8000, scoped, tag = 'output window, operand 0']
    %13 = vsyncpa [#allocation4], 0
    %s14 = scalar_lea.sflag [#allocation4], 1
    %15 = vsyncpa %s14, 0
    %16 = vsyncpa [#allocation7], 0
    %17 = vsyncpa [#allocation10], 0
    %18 = vsyncpa [#allocation13], 0
    %19 = vsyncpa [#allocation5], 0
    %s20 = scalar_lea.sflag [#allocation5], 1
    %21 = vsyncpa %s20, 0
    loop: start=0, step=1, limit=4
    $region2: #{tpu_custom_call.1} parent=1 // loop_pre_header
      _
    $region3: #{tpu_custom_call.1} parent=1 // loop_header
      %s23 = sphi 0, %s27
      %p24 = scmp.ge.s32.totalorder %s23, 4
      %s31 = sphi 0, %s31
      %s33 = sphi 0, %s31
      %s34 = sphi 0, %s33
      %s48 = sphi 0, %s34
      %s54 = sphi 0, %s56
      %s57 = sphi 0, %s54
      %s58 = sphi 0, %s57
      %s74 = sphi 0, %s58
      %s78 = sphi 0, %s78
      %s80 = sphi 0, %s78
      %s81 = sphi 0, %s80
      %s95 = sphi 0, %s81
      %s99 = sphi 0, %s99
      %s101 = sphi 0, %s99
      %s102 = sphi 0, %s101
      %s116 = sphi 0, %s102
      %s120 = sphi 0, %s120
      %s122 = sphi 0, %s120
      %s123 = sphi 0, %s122
      %s137 = sphi 0, %s123
      %s141 = sphi 0, %s141
      %s143 = sphi 0, %s141
      %s144 = sphi 0, %s143
      %s158 = sphi 0, %s144
      %s162 = sphi 0, %s162
      %s164 = sphi 0, %s162
      %s165 = sphi 0, %s164
      %s179 = sphi 0, %s165
      %s185 = sphi 0, %s187
      %s188 = sphi 0, %s185
      %s189 = sphi 0, %s188
      %s205 = sphi 0, %s189
    $region4: #{tpu_custom_call.1} parent=1 // loop_header_branch
      %26 = sbr.rel (%p24) target = $region8
    $region5: #{tpu_custom_call.1} parent=1 // loop_body
      %s28 = ssub.s32 %s23, 1
      %s29 = ssub.s32 %s23, 2
      %s30 = sadd.s32 %s23, 1
      %s32 = sadd.s32 %s31, 1
      %p35 = scmp.eq.s32.totalorder %s23, 1
      %p36 = scmp.ne.s32.totalorder %s31, %s33
      %p37 = scmp.eq.s32.totalorder %s23, 0
      %p38 = por %p36, %p37
      %p39 = scmp.ne.s32.totalorder %s31, %s33
      %p40 = scmp.eq.s32.totalorder %s28, 1
      %p41 = por %p39, %p40
      %p42 = scmp.ne.s32.totalorder %s33, %s34
      %p43 = scmp.eq.s32.totalorder %s28, 0
      %p44 = por %p42, %p43
      %p45 = scmp.ne.s32.totalorder %s33, %s34
      %p46 = scmp.eq.s32.totalorder %s29, 1
      %p47 = por %p45, %p46
      %p49 = scmp.ne.s32.totalorder %s34, %s48
      %p50 = scmp.eq.s32.totalorder %s29, 0
      %p51 = por %p49, %p50
      %s52 = ssub.s32 %s23, %s30
      %p53 = scmp.eq.s32.totalorder %s52, 0
      %s55 = sadd.s32 %s54, 1
      %s56 = scalar_select %p53, %s54, %s55
      %p59 = pneg %p53
      %p60 = scmp.eq.s32.totalorder %s23, 1
      %p61 = por %p59, %p60
      %p62 = scmp.ne.s32.totalorder %s54, %s57
      %p63 = scmp.eq.s32.totalorder %s23, 0
      %p64 = por %p62, %p63
      %p65 = scmp.ne.s32.totalorder %s54, %s57
      %p66 = scmp.eq.s32.totalorder %s28, 1
      %p67 = por %p65, %p66
      %p68 = scmp.ne.s32.totalorder %s57, %s58
      %p69 = scmp.eq.s32.totalorder %s28, 0
      %p70 = por %p68, %p69
      %p71 = scmp.ne.s32.totalorder %s57, %s58
      %p72 = scmp.eq.s32.totalorder %s29, 1
      %p73 = por %p71, %p72
      %p75 = scmp.ne.s32.totalorder %s58, %s74
      %p76 = scmp.eq.s32.totalorder %s29, 0
      %p77 = por %p75, %p76
      %s79 = sadd.s32 %s78, 1
      %p82 = scmp.eq.s32.totalorder %s23, 1
      %p83 = scmp.ne.s32.totalorder %s78, %s80
      %p84 = scmp.eq.s32.totalorder %s23, 0
      %p85 = por %p83, %p84
      %p86 = scmp.ne.s32.totalorder %s78, %s80
      %p87 = scmp.eq.s32.totalorder %s28, 1
      %p88 = por %p86, %p87
      %p89 = scmp.ne.s32.totalorder %s80, %s81
      %p90 = scmp.eq.s32.totalorder %s28, 0
      %p91 = por %p89, %p90
      %p92 = scmp.ne.s32.totalorder %s80, %s81
      %p93 = scmp.eq.s32.totalorder %s29, 1
      %p94 = por %p92, %p93
      %p96 = scmp.ne.s32.totalorder %s81, %s95
      %p97 = scmp.eq.s32.totalorder %s29, 0
      %p98 = por %p96, %p97
      %s100 = sadd.s32 %s99, 1
      %p103 = scmp.eq.s32.totalorder %s23, 1
      %p104 = scmp.ne.s32.totalorder %s99, %s101
      %p105 = scmp.eq.s32.totalorder %s23, 0
      %p106 = por %p104, %p105
      %p107 = scmp.ne.s32.totalorder %s99, %s101
      %p108 = scmp.eq.s32.totalorder %s28, 1
      %p109 = por %p107, %p108
      %p110 = scmp.ne.s32.totalorder %s101, %s102
      %p111 = scmp.eq.s32.totalorder %s28, 0
      %p112 = por %p110, %p111
      %p113 = scmp.ne.s32.totalorder %s101, %s102
      %p114 = scmp.eq.s32.totalorder %s29, 1
      %p115 = por %p113, %p114
      %p117 = scmp.ne.s32.totalorder %s102, %s116
      %p118 = scmp.eq.s32.totalorder %s29, 0
      %p119 = por %p117, %p118
      %s121 = sadd.s32 %s120, 1
      %p124 = scmp.eq.s32.totalorder %s23, 1
      %p125 = scmp.ne.s32.totalorder %s120, %s122
      %p126 = scmp.eq.s32.totalorder %s23, 0
      %p127 = por %p125, %p126
      %p128 = scmp.ne.s32.totalorder %s120, %s122
      %p129 = scmp.eq.s32.totalorder %s28, 1
      %p130 = por %p128, %p129
      %p131 = scmp.ne.s32.totalorder %s122, %s123
      %p132 = scmp.eq.s32.totalorder %s28, 0
      %p133 = por %p131, %p132
      %p134 = scmp.ne.s32.totalorder %s122, %s123
      %p135 = scmp.eq.s32.totalorder %s29, 1
      %p136 = por %p134, %p135
      %p138 = scmp.ne.s32.totalorder %s123, %s137
      %p139 = scmp.eq.s32.totalorder %s29, 0
      %p140 = por %p138, %p139
      %s142 = sadd.s32 %s141, 1
      %p145 = scmp.eq.s32.totalorder %s23, 1
      %p146 = scmp.ne.s32.totalorder %s141, %s143
      %p147 = scmp.eq.s32.totalorder %s23, 0
      %p148 = por %p146, %p147
      %p149 = scmp.ne.s32.totalorder %s141, %s143
      %p150 = scmp.eq.s32.totalorder %s28, 1
      %p151 = por %p149, %p150
      %p152 = scmp.ne.s32.totalorder %s143, %s144
      %p153 = scmp.eq.s32.totalorder %s28, 0
      %p154 = por %p152, %p153
      %p155 = scmp.ne.s32.totalorder %s143, %s144
      %p156 = scmp.eq.s32.totalorder %s29, 1
      %p157 = por %p155, %p156
      %p159 = scmp.ne.s32.totalorder %s144, %s158
      %p160 = scmp.eq.s32.totalorder %s29, 0
      %p161 = por %p159, %p160
      %s163 = sadd.s32 %s162, 1
      %p166 = scmp.eq.s32.totalorder %s23, 1
      %p167 = scmp.ne.s32.totalorder %s162, %s164
      %p168 = scmp.eq.s32.totalorder %s23, 0
      %p169 = por %p167, %p168
      %p170 = scmp.ne.s32.totalorder %s162, %s164
      %p171 = scmp.eq.s32.totalorder %s28, 1
      %p172 = por %p170, %p171
      %p173 = scmp.ne.s32.totalorder %s164, %s165
      %p174 = scmp.eq.s32.totalorder %s28, 0
      %p175 = por %p173, %p174
      %p176 = scmp.ne.s32.totalorder %s164, %s165
      %p177 = scmp.eq.s32.totalorder %s29, 1
      %p178 = por %p176, %p177
      %p180 = scmp.ne.s32.totalorder %s165, %s179
      %p181 = scmp.eq.s32.totalorder %s29, 0
      %p182 = por %p180, %p181
      %s183 = ssub.s32 %s23, %s30
      %p184 = scmp.eq.s32.totalorder %s183, 0
      %s186 = sadd.s32 %s185, 1
      %s187 = scalar_select %p184, %s185, %s186
      %p190 = pneg %p184
      %p191 = scmp.eq.s32.totalorder %s23, 1
      %p192 = por %p190, %p191
      %p193 = scmp.ne.s32.totalorder %s185, %s188
      %p194 = scmp.eq.s32.totalorder %s23, 0
      %p195 = por %p193, %p194
      %p196 = scmp.ne.s32.totalorder %s185, %s188
      %p197 = scmp.eq.s32.totalorder %s28, 1
      %p198 = por %p196, %p197
      %p199 = scmp.ne.s32.totalorder %s188, %s189
      %p200 = scmp.eq.s32.totalorder %s28, 0
      %p201 = por %p199, %p200
      %p202 = scmp.ne.s32.totalorder %s188, %s189
      %p203 = scmp.eq.s32.totalorder %s29, 1
      %p204 = por %p202, %p203
      %p206 = scmp.ne.s32.totalorder %s189, %s205
      %p207 = scmp.eq.s32.totalorder %s29, 0
      %p208 = por %p206, %p207
      %p209 = scmp.le.s32.totalorder 1, %s23
      %p210 = scmp.lt.s32.totalorder %s23, 3
      %p211 = pnand %p209, %p210
      %p212 = pneg %p211
      // Predicated region
      $region9: #{tpu_custom_call.1} parent=5 // pred_check
        _
      $region10: #{tpu_custom_call.1} parent=5 // pred_check_branch
        %214 = sbr.rel (%p211) target = $region12
      $region11: #{tpu_custom_call.1} parent=5 // pred_region
        %s215 = ssub.s32 %s23, 1
        // Predicated region
        $region13: #{tpu_custom_call.1} parent=11 // pred_check
          %p216 = pneg %p44
        $region14: #{tpu_custom_call.1} parent=11 // pred_check_branch
          %218 = sbr.rel (%p216) target = $region16
        $region15: #{tpu_custom_call.1} parent=11 // pred_region
          _
        $region16: #{tpu_custom_call.1} parent=11 // pred_fallthru
          _
        // Predicated region
        $region17: #{tpu_custom_call.1} parent=11 // pred_check
          %p219 = pneg %p91
        $region18: #{tpu_custom_call.1} parent=11 // pred_check_branch
          %221 = sbr.rel (%p219) target = $region20
        $region19: #{tpu_custom_call.1} parent=11 // pred_region
          %s223 = ssub.s32 1024, 1024
          %224 = vsyncadd [#allocation7], %s223
          %s225 = sshll.u32 [#allocation6], 4
          %s226 = int_to_ptr.vmem [resolvable:$true] %s225
          %231 = dma.hbm_to_vmem [thread:$0]  %s2, 1024, %s226, [#allocation7], 64, 64, 4
        $region20: #{tpu_custom_call.1} parent=11 // pred_fallthru
          _
        // Predicated region
        $region21: #{tpu_custom_call.1} parent=11 // pred_check
          %p232 = pneg %p112
        $region22: #{tpu_custom_call.1} parent=11 // pred_check_branch
          %234 = sbr.rel (%p232) target = $region24
        $region23: #{tpu_custom_call.1} parent=11 // pred_region
          %s236 = ssub.s32 1024, 1024
          %237 = vsyncadd [#allocation7], %s236
          %s238 = sshll.u32 [#allocation8], 4
          %s239 = int_to_ptr.vmem [resolvable:$true] %s238
          %244 = dma.hbm_to_vmem [thread:$0]  %s3, 1024, %s239, [#allocation7], 64, 64, 4
        $region24: #{tpu_custom_call.1} parent=11 // pred_fallthru
          _
        // Predicated region
        $region25: #{tpu_custom_call.1} parent=11 // pred_check
          %p245 = pneg %p133
        $region26: #{tpu_custom_call.1} parent=11 // pred_check_branch
          %247 = sbr.rel (%p245) target = $region28
        $region27: #{tpu_custom_call.1} parent=11 // pred_region
          %s249 = ssub.s32 1024, 1024
          %250 = vsyncadd [#allocation10], %s249
          %s251 = sshll.u32 [#allocation9], 4
          %s252 = int_to_ptr.vmem [resolvable:$true] %s251
          %257 = dma.hbm_to_vmem [thread:$0]  %s4, 1024, %s252, [#allocation10], 64, 64, 4
        $region28: #{tpu_custom_call.1} parent=11 // pred_fallthru
          _
        // Predicated region
        $region29: #{tpu_custom_call.1} parent=11 // pred_check
          %p258 = pneg %p154
        $region30: #{tpu_custom_call.1} parent=11 // pred_check_branch
          %260 = sbr.rel (%p258) target = $region32
        $region31: #{tpu_custom_call.1} parent=11 // pred_region
          %s262 = ssub.s32 1024, 1024
          %263 = vsyncadd [#allocation10], %s262
          %s264 = sshll.u32 [#allocation11], 4
          %s265 = int_to_ptr.vmem [resolvable:$true] %s264
          %270 = dma.hbm_to_vmem [thread:$0]  %s5, 1024, %s265, [#allocation10], 64, 64, 4
        $region32: #{tpu_custom_call.1} parent=11 // pred_fallthru
          _
        // Predicated region
        $region33: #{tpu_custom_call.1} parent=11 // pred_check
          %p271 = pneg %p175
        $region34: #{tpu_custom_call.1} parent=11 // pred_check_branch
          %273 = sbr.rel (%p271) target = $region36
        $region35: #{tpu_custom_call.1} parent=11 // pred_region
          %s275 = ssub.s32 256, 256
          %276 = vsyncadd [#allocation13], %s275
          %s277 = sshll.u32 [#allocation12], 4
          %s278 = int_to_ptr.vmem [resolvable:$true] %s277
          %283 = dma.hbm_to_vmem [thread:$0]  %s6, 256, %s278, [#allocation13], 128, 128, 8
        $region36: #{tpu_custom_call.1} parent=11 // pred_fallthru
          _
      $region12: #{tpu_custom_call.1} parent=5 // pred_fallthru
        _
      %p284 = scmp.lt.s32.totalorder %s23, 2
      // Predicated region
      $region37: #{tpu_custom_call.1} parent=5 // pred_check
        %p285 = pneg %p284
      $region38: #{tpu_custom_call.1} parent=5 // pred_check_branch
        %287 = sbr.rel (%p285) target = $region40
      $region39: #{tpu_custom_call.1} parent=5 // pred_region
        // Predicated region
        $region41: #{tpu_custom_call.1} parent=39 // pred_check
          %p288 = pneg %p64
        $region42: #{tpu_custom_call.1} parent=39 // pred_check_branch
          %290 = sbr.rel (%p288) target = $region44
        $region43: #{tpu_custom_call.1} parent=39 // pred_region
          %s291 = sand.u32 %s54, 1
          %s292 = scalar_lea.sflag [#allocation4], %s291
          %s293 = sand.u32 %s54, 1
          %s294 = smul.addr %s293, 16
          %s295 = scalar_lea.vmem [#allocation3], %s294
          %s296 = smul.u32 4, %s23
          %s298 = ssub.s32 256, 256
          %299 = vsyncadd %s292, %s298
          %s300 = smul.addr %s296, 64
          %s301 = scalar_lea.hbm %s1, %s300
          %s302 = sshll.u32 %s295, 4
          %s303 = int_to_ptr.vmem [resolvable:$true] %s302
          %308 = dma.hbm_to_vmem [thread:$0]  %s301, 256, %s303, %s292, 64, 64, 4
        $region44: #{tpu_custom_call.1} parent=39 // pred_fallthru
          _
      $region40: #{tpu_custom_call.1} parent=5 // pred_fallthru
        _
      %p309 = scmp.le.s32.totalorder 1, %s23
      %p310 = scmp.lt.s32.totalorder %s23, 3
      %p311 = pnand %p309, %p310
      %p312 = pneg %p311
      // Predicated region
      $region45: #{tpu_custom_call.1} parent=5 // pred_check
        _
      $region46: #{tpu_custom_call.1} parent=5 // pred_check_branch
        %314 = sbr.rel (%p311) target = $region48
      $region47: #{tpu_custom_call.1} parent=5 // pred_region
        %s315 = ssub.s32 %s23, 1
        %s316 = sand.u32 %s57, 1
        %s317 = scalar_lea.sflag [#allocation4], %s316
        %s318 = sand.u32 %s57, 1
        %s319 = smul.addr %s318, 16
        %s320 = scalar_lea.vmem [#allocation3], %s319
        // Predicated region
        $region49: #{tpu_custom_call.1} parent=47 // pred_check
          %p321 = pneg %p70
        $region50: #{tpu_custom_call.1} parent=47 // pred_check_branch
          %323 = sbr.rel (%p321) target = $region52
        $region51: #{tpu_custom_call.1} parent=47 // pred_region
          %324 = dma.done %s317, 256
        $region52: #{tpu_custom_call.1} parent=47 // pred_fallthru
          _
        // Predicated region
        $region53: #{tpu_custom_call.1} parent=47 // pred_check
          %p325 = pneg %p91
        $region54: #{tpu_custom_call.1} parent=47 // pred_check_branch
          %327 = sbr.rel (%p325) target = $region56
        $region55: #{tpu_custom_call.1} parent=47 // pred_region
          %328 = dma.done [#allocation7], 1024
        $region56: #{tpu_custom_call.1} parent=47 // pred_fallthru
          _
        // Predicated region
        $region57: #{tpu_custom_call.1} parent=47 // pred_check
          %p329 = pneg %p112
        $region58: #{tpu_custom_call.1} parent=47 // pred_check_branch
          %331 = sbr.rel (%p329) target = $region60
        $region59: #{tpu_custom_call.1} parent=47 // pred_region
          %332 = dma.done [#allocation7], 1024
        $region60: #{tpu_custom_call.1} parent=47 // pred_fallthru
          _
        // Predicated region
        $region61: #{tpu_custom_call.1} parent=47 // pred_check
          %p333 = pneg %p133
        $region62: #{tpu_custom_call.1} parent=47 // pred_check_branch
          %335 = sbr.rel (%p333) target = $region64
        $region63: #{tpu_custom_call.1} parent=47 // pred_region
          %336 = dma.done [#allocation10], 1024
        $region64: #{tpu_custom_call.1} parent=47 // pred_fallthru
          _
        // Predicated region
        $region65: #{tpu_custom_call.1} parent=47 // pred_check
          %p337 = pneg %p154
        $region66: #{tpu_custom_call.1} parent=47 // pred_check_branch
          %339 = sbr.rel (%p337) target = $region68
        $region67: #{tpu_custom_call.1} parent=47 // pred_region
          %340 = dma.done [#allocation10], 1024
        $region68: #{tpu_custom_call.1} parent=47 // pred_fallthru
          _
        // Predicated region
        $region69: #{tpu_custom_call.1} parent=47 // pred_check
          %p341 = pneg %p175
        $region70: #{tpu_custom_call.1} parent=47 // pred_check_branch
          %343 = sbr.rel (%p341) target = $region72
        $region71: #{tpu_custom_call.1} parent=47 // pred_region
          %344 = dma.done [#allocation13], 256
        $region72: #{tpu_custom_call.1} parent=47 // pred_fallthru
          _
        %p345 = pneg %p44
        %p346 = pneg %p41
        %s347 = sand.u32 %s57, 1
        %s348 = scalar_lea.sflag [#allocation4], %s347
        %s349 = sand.u32 %s57, 1
        %s350 = smul.addr %s349, 16
        %s351 = scalar_lea.vmem [#allocation3], %s350
        %p352 = pneg %p70
        %p353 = pneg %p67
        %p354 = pneg %p91
        %p355 = pneg %p88
        %p356 = pneg %p112
        %p357 = pneg %p109
        %p358 = pneg %p133
        %p359 = pneg %p130
        %p360 = pneg %p154
        %p361 = pneg %p151
        %p362 = pneg %p175
        %p363 = pneg %p172
        %p364 = pneg %p201
        %p365 = pneg %p198
        %s366 = sand.u32 %s188, 1
        %s367 = scalar_lea.sflag [#allocation5], %s366
        %s368 = sand.u32 %s188, 1
        %s369 = smul.addr %s368, 32
        %s370 = scalar_lea.vmem [#allocation14], %s369
        %s371 = smul.u32 4, %s28
        %s372 = smul.u32 4, %s28
        %s374 = sld [smem:[#allocation2]]
        %v375 = vld [vmem:[%s320] sm:$0xf]
        %v376 = vld [vmem:[%s320 + $0x4] sm:$0xf]
        %v377 = vld [vmem:[%s320 + $0x8] sm:$0xf]
        %v378 = vld [vmem:[%s320 + $0xc] sm:$0xf]
        %v379 = vld [vmem:[#allocation6] sm:$0xf]
        %v380 = vld [vmem:[#allocation6 + $0x4] sm:$0xf]
        %v381 = vld [vmem:[#allocation6 + $0x8] sm:$0xf]
        %v382 = vld [vmem:[#allocation6 + $0xc] sm:$0xf]
        %v383 = vld [vmem:[#allocation6 + $0x10] sm:$0xf]
        %v384 = vld [vmem:[#allocation6 + $0x14] sm:$0xf]
        %v385 = vld [vmem:[#allocation6 + $0x18] sm:$0xf]
        %v386 = vld [vmem:[#allocation6 + $0x1c] sm:$0xf]
        %v387 = vld [vmem:[#allocation6 + $0x20] sm:$0xf]
        %v388 = vld [vmem:[#allocation6 + $0x24] sm:$0xf]
        %v389 = vld [vmem:[#allocation6 + $0x28] sm:$0xf]
        %v390 = vld [vmem:[#allocation6 + $0x2c] sm:$0xf]
        %v391 = vld [vmem:[#allocation6 + $0x30] sm:$0xf]
        %v392 = vld [vmem:[#allocation6 + $0x34] sm:$0xf]
        %v393 = vld [vmem:[#allocation6 + $0x38] sm:$0xf]
        %v394 = vld [vmem:[#allocation6 + $0x3c] sm:$0xf]
        %v395 = vld [vmem:[#allocation12] sm:$0x1]
        %v396 = vlaneseq
        %v397 = vshrl.u32 %v396, 7
        %v398 = vsub.s32 0, %v397
        %v399 = vrot.slane %v395, %v398
        %v404 = vunpack.c.l.b16 %v375
        %v405 = vunpack.c.l.b16 %v376
        %v406 = vunpack.c.l.b16 %v377
        %v407 = vunpack.c.l.b16 %v378
        %v408 = vpack.c.b16 %v405, %v404
        %v409 = vpack.c.b16 %v407, %v406
        %v428 = vunpack.c.l.b16 %v379
        %v429 = vunpack.c.l.b16 %v380
        %v430 = vunpack.c.l.b16 %v381
        %v431 = vunpack.c.l.b16 %v382
        %v432 = vunpack.c.l.b16 %v383
        %v433 = vunpack.c.l.b16 %v384
        %v434 = vunpack.c.l.b16 %v385
        %v435 = vunpack.c.l.b16 %v386
        %v436 = vunpack.c.l.b16 %v387
        %v437 = vunpack.c.l.b16 %v388
        %v438 = vunpack.c.l.b16 %v389
        %v439 = vunpack.c.l.b16 %v390
        %v440 = vunpack.c.l.b16 %v391
        %v441 = vunpack.c.l.b16 %v392
        %v442 = vunpack.c.l.b16 %v393
        %v443 = vunpack.c.l.b16 %v394
        %v444 = vpack.c.b16 %v429, %v428
        %v445 = vpack.c.b16 %v431, %v430
        %v446 = vpack.c.b16 %v433, %v432
        %v447 = vpack.c.b16 %v435, %v434
        %v448 = vpack.c.b16 %v437, %v436
        %v449 = vpack.c.b16 %v439, %v438
        %v450 = vpack.c.b16 %v441, %v440
        %v451 = vpack.c.b16 %v443, %v442
        %460 = vmatprep.subr.bf16.mxu0 0
        %461 = vmatpush1.bf16.msra.mxu0 %v451
        %462 = vmatprep.subr.bf16.mxu0 0
        %463 = vmatpush1.bf16.msra.mxu0 %v450
        %464 = vmatprep.subr.bf16.mxu0 0
        %465 = vmatpush1.bf16.msra.mxu0 %v449
        %466 = vmatprep.subr.bf16.mxu0 0
        %467 = vmatpush1.bf16.msra.mxu0 %v448
        %468 = vmatprep.subr.bf16.mxu0 0
        %469 = vmatpush1.bf16.msra.mxu0 %v447
        %470 = vmatprep.subr.bf16.mxu0 0
        %471 = vmatpush1.bf16.msra.mxu0 %v446
        %472 = vmatprep.subr.bf16.mxu0 0
        %473 = vmatpush1.bf16.msra.mxu0 %v445
        %474 = vmatprep.subr.bf16.mxu0 0
        %475 = vmatpush1.bf16.msra.mxu0 %v444
        %476 = vmatprep.subr.bf16.mxu0 0
        %477 = vmatpush2.bf16.msra.mxu0 0
        %478 = vmatprep.subr.bf16.mxu0 0
        %479 = vmatpush2.bf16.msra.mxu0 0
        %480 = vmatprep.subr.bf16.mxu0 0
        %481 = vmatpush2.bf16.msra.mxu0 0
        %482 = vmatprep.subr.bf16.mxu0 0
        %483 = vmatpush2.bf16.msra.mxu0 0
        %484 = vmatprep.subr.bf16.mxu0 0
        %485 = vmatpush2.bf16.msra.mxu0 0
        %486 = vmatprep.subr.bf16.mxu0 0
        %487 = vmatpush2.bf16.msra.mxu0 0
        %488 = vmatprep.subr.bf16.mxu0 0
        %489 = vmatpush2.bf16.msra.mxu0 0
        %490 = vmatprep.subr.bf16.mxu0 0
        %491 = vmatpush2.bf16.msra.mxu0 0
        %492 = vmatprep.mubr.bf16.mxu0 0
        %493 = vmatmul.mubr.bf16.gmra.mxu0 %v408
        %v494 = vpop.f32.mrf.mxu0
        %v495 = vadd.f32 %v399, %v494
        %v496 = vpop.f32.mrf.mxu0
        %v497 = vpop.f32.mrf.mxu0
        %v498 = vadd.f32 %v399, %v497
        %v499 = vpop.f32.mrf.mxu0
        %500 = vmatprep.mubr.bf16.mxu0 0
        %501 = vmatmul.mubr.bf16.gmra.mxu0 %v409
        %v502 = vpop.f32.mrf.mxu0
        %v503 = vadd.f32 %v399, %v502
        %v504 = vpop.f32.mrf.mxu0
        %v505 = vpop.f32.mrf.mxu0
        %v506 = vadd.f32 %v399, %v505
        %v507 = vpop.f32.mrf.mxu0
        %508 = vdwg.mxu0
        %509 = vadd.xlane.f32.xlu0 %v495
        %v510 = vpop.xlane.xlu0 %509
        %511 = vadd.xlane.f32.xlu0 %v498
        %v512 = vpop.xlane.xlu0 %511
        %513 = vadd.xlane.f32.xlu0 %v503
        %v514 = vpop.xlane.xlu0 %513
        %515 = vadd.xlane.f32.xlu0 %v506
        %v516 = vpop.xlane.xlu0 %515
        %v517 = vmul.f32 %v510, 0.015625
        %v518 = vmul.f32 %v512, 0.015625
        %v519 = vmul.f32 %v514, 0.015625
        %v520 = vmul.f32 %v516, 0.015625
        %v521 = vmul.f32 %v495, %v495
        %v522 = vmul.f32 %v498, %v498
        %v523 = vmul.f32 %v503, %v503
        %v524 = vmul.f32 %v506, %v506
        %525 = vadd.xlane.f32.xlu0 %v521
        %v526 = vpop.xlane.xlu0 %525
        %527 = vadd.xlane.f32.xlu0 %v522
        %v528 = vpop.xlane.xlu0 %527
        %529 = vadd.xlane.f32.xlu0 %v523
        %v530 = vpop.xlane.xlu0 %529
        %531 = vadd.xlane.f32.xlu0 %v524
        %v532 = vpop.xlane.xlu0 %531
        %v533 = vmul.f32 %v526, 0.015625
        %v534 = vmul.f32 %v528, 0.015625
        %v535 = vmul.f32 %v530, 0.015625
        %v536 = vmul.f32 %v532, 0.015625
        %v537 = vmul.f32 %v517, %v517
        %v538 = vmul.f32 %v518, %v518
        %v539 = vmul.f32 %v519, %v519
        %v540 = vmul.f32 %v520, %v520
        %v541 = vsub.f32 %v533, %v537
        %v542 = vsub.f32 %v534, %v538
        %v543 = vsub.f32 %v535, %v539
        %v544 = vsub.f32 %v536, %v540
        %v545 = vsub.f32 %v495, %v517
        %v546 = vsub.f32 %v498, %v518
        %v547 = vsub.f32 %v503, %v519
        %v548 = vsub.f32 %v506, %v520
        %v549 = vadd.f32 %v541, 1e-05
        %v550 = vadd.f32 %v542, 1e-05
        %v551 = vadd.f32 %v543, 1e-05
        %v552 = vadd.f32 %v544, 1e-05
        %v553 = vrsqrt.pop %v549
        %v554 = vrsqrt.pop %v550
        %v555 = vrsqrt.pop %v551
        %v556 = vrsqrt.pop %v552
        %v557 = vmul.f32 %v545, %v553
        %v558 = vmul.f32 %v546, %v554
        %v559 = vmul.f32 %v547, %v555
        %v560 = vmul.f32 %v548, %v556
        %v561 = vld [vmem:[#allocation12 + $0x1] sm:$0x1]
        %v562 = vlaneseq
        %v563 = vshrl.u32 %v562, 7
        %v564 = vsub.s32 0, %v563
        %v565 = vrot.slane %v561, %v564
        %v566 = vmul.f32 %v557, %v565
        %v567 = vmul.f32 %v558, %v565
        %v568 = vmul.f32 %v559, %v565
        %v569 = vmul.f32 %v560, %v565
        %v570 = vld [vmem:[#allocation12 + $0x2] sm:$0x1]
        %v571 = vlaneseq
        %v572 = vshrl.u32 %v571, 7
        %v573 = vsub.s32 0, %v572
        %v574 = vrot.slane %v570, %v573
        %v575 = vadd.f32 %v566, %v574
        %v576 = vadd.f32 %v567, %v574
        %v577 = vadd.f32 %v568, %v574
        %v578 = vadd.f32 %v569, %v574
        %v579 = vmax.f32 %v575, 0.0
        %v580 = vmax.f32 %v576, 0.0
        %v581 = vmax.f32 %v577, 0.0
        %v582 = vmax.f32 %v578, 0.0
        %v583 = vpack.c.bf16 %v580, %v579
        %v584 = vpack.c.bf16 %v582, %v581
        %v585 = vld [vmem:[#allocation8] sm:$0xf]
        %v586 = vld [vmem:[#allocation8 + $0x4] sm:$0xf]
        %v587 = vld [vmem:[#allocation8 + $0x8] sm:$0xf]
        %v588 = vld [vmem:[#allocation8 + $0xc] sm:$0xf]
        %v589 = vld [vmem:[#allocation8 + $0x10] sm:$0xf]
        %v590 = vld [vmem:[#allocation8 + $0x14] sm:$0xf]
        %v591 = vld [vmem:[#allocation8 + $0x18] sm:$0xf]
        %v592 = vld [vmem:[#allocation8 + $0x1c] sm:$0xf]
        %v593 = vld [vmem:[#allocation8 + $0x20] sm:$0xf]
        %v594 = vld [vmem:[#allocation8 + $0x24] sm:$0xf]
        %v595 = vld [vmem:[#allocation8 + $0x28] sm:$0xf]
        %v596 = vld [vmem:[#allocation8 + $0x2c] sm:$0xf]
        %v597 = vld [vmem:[#allocation8 + $0x30] sm:$0xf]
        %v598 = vld [vmem:[#allocation8 + $0x34] sm:$0xf]
        %v599 = vld [vmem:[#allocation8 + $0x38] sm:$0xf]
        %v600 = vld [vmem:[#allocation8 + $0x3c] sm:$0xf]
        %v601 = vld [vmem:[#allocation12 + $0x3] sm:$0x1]
        %v602 = vlaneseq
        %v603 = vshrl.u32 %v602, 7
        %v604 = vsub.s32 0, %v603
        %v605 = vrot.slane %v601, %v604
        %v622 = vunpack.c.l.b16 %v585
        %v623 = vunpack.c.l.b16 %v586
        %v624 = vunpack.c.l.b16 %v587
        %v625 = vunpack.c.l.b16 %v588
        %v626 = vunpack.c.l.b16 %v589
        %v627 = vunpack.c.l.b16 %v590
        %v628 = vunpack.c.l.b16 %v591
        %v629 = vunpack.c.l.b16 %v592
        %v630 = vunpack.c.l.b16 %v593
        %v631 = vunpack.c.l.b16 %v594
        %v632 = vunpack.c.l.b16 %v595
        %v633 = vunpack.c.l.b16 %v596
        %v634 = vunpack.c.l.b16 %v597
        %v635 = vunpack.c.l.b16 %v598
        %v636 = vunpack.c.l.b16 %v599
        %v637 = vunpack.c.l.b16 %v600
        %v638 = vpack.c.b16 %v623, %v622
        %v639 = vpack.c.b16 %v625, %v624
        %v640 = vpack.c.b16 %v627, %v626
        %v641 = vpack.c.b16 %v629, %v628
        %v642 = vpack.c.b16 %v631, %v630
        %v643 = vpack.c.b16 %v633, %v632
        %v644 = vpack.c.b16 %v635, %v634
        %v645 = vpack.c.b16 %v637, %v636
        %654 = vmatprep.subr.bf16.mxu0 0
        %655 = vmatpush1.bf16.msra.mxu0 %v645
        %656 = vmatprep.subr.bf16.mxu0 0
        %657 = vmatpush1.bf16.msra.mxu0 %v644
        %658 = vmatprep.subr.bf16.mxu0 0
        %659 = vmatpush1.bf16.msra.mxu0 %v643
        %660 = vmatprep.subr.bf16.mxu0 0
        %661 = vmatpush1.bf16.msra.mxu0 %v642
        %662 = vmatprep.subr.bf16.mxu0 0
        %663 = vmatpush1.bf16.msra.mxu0 %v641
        %664 = vmatprep.subr.bf16.mxu0 0
        %665 = vmatpush1.bf16.msra.mxu0 %v640
        %666 = vmatprep.subr.bf16.mxu0 0
        %667 = vmatpush1.bf16.msra.mxu0 %v639
        %668 = vmatprep.subr.bf16.mxu0 0
        %669 = vmatpush1.bf16.msra.mxu0 %v638
        %670 = vmatprep.subr.bf16.mxu0 0
        %671 = vmatpush2.bf16.msra.mxu0 0
        %672 = vmatprep.subr.bf16.mxu0 0
        %673 = vmatpush2.bf16.msra.mxu0 0
        %674 = vmatprep.subr.bf16.mxu0 0
        %675 = vmatpush2.bf16.msra.mxu0 0
        %676 = vmatprep.subr.bf16.mxu0 0
        %677 = vmatpush2.bf16.msra.mxu0 0
        %678 = vmatprep.subr.bf16.mxu0 0
        %679 = vmatpush2.bf16.msra.mxu0 0
        %680 = vmatprep.subr.bf16.mxu0 0
        %681 = vmatpush2.bf16.msra.mxu0 0
        %682 = vmatprep.subr.bf16.mxu0 0
        %683 = vmatpush2.bf16.msra.mxu0 0
        %684 = vmatprep.subr.bf16.mxu0 0
        %685 = vmatpush2.bf16.msra.mxu0 0
        %686 = vmatprep.mubr.bf16.mxu0 0
        %687 = vmatmul.mubr.bf16.gmra.mxu0 %v583
        %v688 = vpop.f32.mrf.mxu0
        %v689 = vadd.f32 %v605, %v688
        %v690 = vpop.f32.mrf.mxu0
        %v691 = vpop.f32.mrf.mxu0
        %v692 = vadd.f32 %v605, %v691
        %v693 = vpop.f32.mrf.mxu0
        %694 = vmatprep.mubr.bf16.mxu0 0
        %695 = vmatmul.mubr.bf16.gmra.mxu0 %v584
        %v696 = vpop.f32.mrf.mxu0
        %v697 = vadd.f32 %v605, %v696
        %v698 = vpop.f32.mrf.mxu0
        %v699 = vpop.f32.mrf.mxu0
        %v700 = vadd.f32 %v605, %v699
        %v701 = vpop.f32.mrf.mxu0
        %702 = vdwg.mxu0
        %703 = vadd.xlane.f32.xlu0 %v689
        %v704 = vpop.xlane.xlu0 %703
        %705 = vadd.xlane.f32.xlu0 %v692
        %v706 = vpop.xlane.xlu0 %705
        %707 = vadd.xlane.f32.xlu0 %v697
        %v708 = vpop.xlane.xlu0 %707
        %709 = vadd.xlane.f32.xlu0 %v700
        %v710 = vpop.xlane.xlu0 %709
        %v711 = vmul.f32 %v704, 0.015625
        %v712 = vmul.f32 %v706, 0.015625
        %v713 = vmul.f32 %v708, 0.015625
        %v714 = vmul.f32 %v710, 0.015625
        %v715 = vmul.f32 %v689, %v689
        %v716 = vmul.f32 %v692, %v692
        %v717 = vmul.f32 %v697, %v697
        %v718 = vmul.f32 %v700, %v700
        %719 = vadd.xlane.f32.xlu0 %v715
        %v720 = vpop.xlane.xlu0 %719
        %721 = vadd.xlane.f32.xlu0 %v716
        %v722 = vpop.xlane.xlu0 %721
        %723 = vadd.xlane.f32.xlu0 %v717
        %v724 = vpop.xlane.xlu0 %723
        %725 = vadd.xlane.f32.xlu0 %v718
        %v726 = vpop.xlane.xlu0 %725
        %v727 = vmul.f32 %v720, 0.015625
        %v728 = vmul.f32 %v722, 0.015625
        %v729 = vmul.f32 %v724, 0.015625
        %v730 = vmul.f32 %v726, 0.015625
        %v731 = vmul.f32 %v711, %v711
        %v732 = vmul.f32 %v712, %v712
        %v733 = vmul.f32 %v713, %v713
        %v734 = vmul.f32 %v714, %v714
        %v735 = vsub.f32 %v727, %v731
        %v736 = vsub.f32 %v728, %v732
        %v737 = vsub.f32 %v729, %v733
        %v738 = vsub.f32 %v730, %v734
        %v739 = vsub.f32 %v689, %v711
        %v740 = vsub.f32 %v692, %v712
        %v741 = vsub.f32 %v697, %v713
        %v742 = vsub.f32 %v700, %v714
        %v743 = vadd.f32 %v735, 1e-05
        %v744 = vadd.f32 %v736, 1e-05
        %v745 = vadd.f32 %v737, 1e-05
        %v746 = vadd.f32 %v738, 1e-05
        %v747 = vrsqrt.pop %v743
        %v748 = vrsqrt.pop %v744
        %v749 = vrsqrt.pop %v745
        %v750 = vrsqrt.pop %v746
        %v751 = vmul.f32 %v739, %v747
        %v752 = vmul.f32 %v740, %v748
        %v753 = vmul.f32 %v741, %v749
        %v754 = vmul.f32 %v742, %v750
        %v755 = vld [vmem:[#allocation12 + $0x4] sm:$0x1]
        %v756 = vlaneseq
        %v757 = vshrl.u32 %v756, 7
        %v758 = vsub.s32 0, %v757
        %v759 = vrot.slane %v755, %v758
        %v760 = vmul.f32 %v751, %v759
        %v761 = vmul.f32 %v752, %v759
        %v762 = vmul.f32 %v753, %v759
        %v763 = vmul.f32 %v754, %v759
        %v764 = vld [vmem:[#allocation12 + $0x5] sm:$0x1]
        %v765 = vlaneseq
        %v766 = vshrl.u32 %v765, 7
        %v767 = vsub.s32 0, %v766
        %v768 = vrot.slane %v764, %v767
        %v769 = vadd.f32 %v760, %v768
        %v770 = vadd.f32 %v761, %v768
        %v771 = vadd.f32 %v762, %v768
        %v772 = vadd.f32 %v763, %v768
        %v773 = vmax.f32 %v769, 0.0
        %v774 = vmax.f32 %v770, 0.0
        %v775 = vmax.f32 %v771, 0.0
        %v776 = vmax.f32 %v772, 0.0
        %v777 = vpack.c.bf16 %v774, %v773
        %v778 = vpack.c.bf16 %v776, %v775
        %v779 = vld [vmem:[#allocation9] sm:$0xf]
        %v780 = vld [vmem:[#allocation9 + $0x4] sm:$0xf]
        %v781 = vld [vmem:[#allocation9 + $0x8] sm:$0xf]
        %v782 = vld [vmem:[#allocation9 + $0xc] sm:$0xf]
        %v783 = vld [vmem:[#allocation9 + $0x10] sm:$0xf]
        %v784 = vld [vmem:[#allocation9 + $0x14] sm:$0xf]
        %v785 = vld [vmem:[#allocation9 + $0x18] sm:$0xf]
        %v786 = vld [vmem:[#allocation9 + $0x1c] sm:$0xf]
        %v787 = vld [vmem:[#allocation9 + $0x20] sm:$0xf]
        %v788 = vld [vmem:[#allocation9 + $0x24] sm:$0xf]
        %v789 = vld [vmem:[#allocation9 + $0x28] sm:$0xf]
        %v790 = vld [vmem:[#allocation9 + $0x2c] sm:$0xf]
        %v791 = vld [vmem:[#allocation9 + $0x30] sm:$0xf]
        %v792 = vld [vmem:[#allocation9 + $0x34] sm:$0xf]
        %v793 = vld [vmem:[#allocation9 + $0x38] sm:$0xf]
        %v794 = vld [vmem:[#allocation9 + $0x3c] sm:$0xf]
        %v795 = vld [vmem:[#allocation12 + $0x6] sm:$0x1]
        %v796 = vlaneseq
        %v797 = vshrl.u32 %v796, 7
        %v798 = vsub.s32 0, %v797
        %v799 = vrot.slane %v795, %v798
        %v816 = vunpack.c.l.b16 %v779
        %v817 = vunpack.c.l.b16 %v780
        %v818 = vunpack.c.l.b16 %v781
        %v819 = vunpack.c.l.b16 %v782
        %v820 = vunpack.c.l.b16 %v783
        %v821 = vunpack.c.l.b16 %v784
        %v822 = vunpack.c.l.b16 %v785
        %v823 = vunpack.c.l.b16 %v786
        %v824 = vunpack.c.l.b16 %v787
        %v825 = vunpack.c.l.b16 %v788
        %v826 = vunpack.c.l.b16 %v789
        %v827 = vunpack.c.l.b16 %v790
        %v828 = vunpack.c.l.b16 %v791
        %v829 = vunpack.c.l.b16 %v792
        %v830 = vunpack.c.l.b16 %v793
        %v831 = vunpack.c.l.b16 %v794
        %v832 = vpack.c.b16 %v817, %v816
        %v833 = vpack.c.b16 %v819, %v818
        %v834 = vpack.c.b16 %v821, %v820
        %v835 = vpack.c.b16 %v823, %v822
        %v836 = vpack.c.b16 %v825, %v824
        %v837 = vpack.c.b16 %v827, %v826
        %v838 = vpack.c.b16 %v829, %v828
        %v839 = vpack.c.b16 %v831, %v830
        %848 = vmatprep.subr.bf16.mxu0 0
        %849 = vmatpush1.bf16.msra.mxu0 %v839
        %850 = vmatprep.subr.bf16.mxu0 0
        %851 = vmatpush1.bf16.msra.mxu0 %v838
        %852 = vmatprep.subr.bf16.mxu0 0
        %853 = vmatpush1.bf16.msra.mxu0 %v837
        %854 = vmatprep.subr.bf16.mxu0 0
        %855 = vmatpush1.bf16.msra.mxu0 %v836
        %856 = vmatprep.subr.bf16.mxu0 0
        %857 = vmatpush1.bf16.msra.mxu0 %v835
        %858 = vmatprep.subr.bf16.mxu0 0
        %859 = vmatpush1.bf16.msra.mxu0 %v834
        %860 = vmatprep.subr.bf16.mxu0 0
        %861 = vmatpush1.bf16.msra.mxu0 %v833
        %862 = vmatprep.subr.bf16.mxu0 0
        %863 = vmatpush1.bf16.msra.mxu0 %v832
        %864 = vmatprep.subr.bf16.mxu0 0
        %865 = vmatpush2.bf16.msra.mxu0 0
        %866 = vmatprep.subr.bf16.mxu0 0
        %867 = vmatpush2.bf16.msra.mxu0 0
        %868 = vmatprep.subr.bf16.mxu0 0
        %869 = vmatpush2.bf16.msra.mxu0 0
        %870 = vmatprep.subr.bf16.mxu0 0
        %871 = vmatpush2.bf16.msra.mxu0 0
        %872 = vmatprep.subr.bf16.mxu0 0
        %873 = vmatpush2.bf16.msra.mxu0 0
        %874 = vmatprep.subr.bf16.mxu0 0
        %875 = vmatpush2.bf16.msra.mxu0 0
        %876 = vmatprep.subr.bf16.mxu0 0
        %877 = vmatpush2.bf16.msra.mxu0 0
        %878 = vmatprep.subr.bf16.mxu0 0
        %879 = vmatpush2.bf16.msra.mxu0 0
        %880 = vmatprep.mubr.bf16.mxu0 0
        %881 = vmatmul.mubr.bf16.gmra.mxu0 %v777
        %v882 = vpop.f32.mrf.mxu0
        %v883 = vadd.f32 %v799, %v882
        %v884 = vpop.f32.mrf.mxu0
        %v885 = vpop.f32.mrf.mxu0
        %v886 = vadd.f32 %v799, %v885
        %v887 = vpop.f32.mrf.mxu0
        %888 = vmatprep.mubr.bf16.mxu0 0
        %889 = vmatmul.mubr.bf16.gmra.mxu0 %v778
        %v890 = vpop.f32.mrf.mxu0
        %v891 = vadd.f32 %v799, %v890
        %v892 = vpop.f32.mrf.mxu0
        %v893 = vpop.f32.mrf.mxu0
        %v894 = vadd.f32 %v799, %v893
        %v895 = vpop.f32.mrf.mxu0
        %896 = vdwg.mxu0
        %897 = vadd.xlane.f32.xlu0 %v883
        %v898 = vpop.xlane.xlu0 %897
        %899 = vadd.xlane.f32.xlu0 %v886
        %v900 = vpop.xlane.xlu0 %899
        %901 = vadd.xlane.f32.xlu0 %v891
        %v902 = vpop.xlane.xlu0 %901
        %903 = vadd.xlane.f32.xlu0 %v894
        %v904 = vpop.xlane.xlu0 %903
        %v905 = vmul.f32 %v898, 0.03125
        %v906 = vmul.f32 %v900, 0.03125
        %v907 = vmul.f32 %v902, 0.03125
        %v908 = vmul.f32 %v904, 0.03125
        %v909 = vmul.f32 %v883, %v883
        %v910 = vmul.f32 %v886, %v886
        %v911 = vmul.f32 %v891, %v891
        %v912 = vmul.f32 %v894, %v894
        %913 = vadd.xlane.f32.xlu0 %v909
        %v914 = vpop.xlane.xlu0 %913
        %915 = vadd.xlane.f32.xlu0 %v910
        %v916 = vpop.xlane.xlu0 %915
        %917 = vadd.xlane.f32.xlu0 %v911
        %v918 = vpop.xlane.xlu0 %917
        %919 = vadd.xlane.f32.xlu0 %v912
        %v920 = vpop.xlane.xlu0 %919
        %v921 = vmul.f32 %v914, 0.03125
        %v922 = vmul.f32 %v916, 0.03125
        %v923 = vmul.f32 %v918, 0.03125
        %v924 = vmul.f32 %v920, 0.03125
        %v925 = vmul.f32 %v905, %v905
        %v926 = vmul.f32 %v906, %v906
        %v927 = vmul.f32 %v907, %v907
        %v928 = vmul.f32 %v908, %v908
        %v929 = vsub.f32 %v921, %v925
        %v930 = vsub.f32 %v922, %v926
        %v931 = vsub.f32 %v923, %v927
        %v932 = vsub.f32 %v924, %v928
        %v933 = vsub.f32 %v883, %v905
        %v934 = vsub.f32 %v886, %v906
        %v935 = vsub.f32 %v891, %v907
        %v936 = vsub.f32 %v894, %v908
        %v937 = vadd.f32 %v929, 1e-05
        %v938 = vadd.f32 %v930, 1e-05
        %v939 = vadd.f32 %v931, 1e-05
        %v940 = vadd.f32 %v932, 1e-05
        %v941 = vrsqrt.pop %v937
        %v942 = vrsqrt.pop %v938
        %v943 = vrsqrt.pop %v939
        %v944 = vrsqrt.pop %v940
        %v945 = vmul.f32 %v933, %v941
        %v946 = vmul.f32 %v934, %v942
        %v947 = vmul.f32 %v935, %v943
        %v948 = vmul.f32 %v936, %v944
        %v949 = vld [vmem:[#allocation12 + $0x7] sm:$0x1]
        %v950 = vlaneseq
        %v951 = vshrl.u32 %v950, 7
        %v952 = vsub.s32 0, %v951
        %v953 = vrot.slane %v949, %v952
        %v954 = vmul.f32 %v945, %v953
        %v955 = vmul.f32 %v946, %v953
        %v956 = vmul.f32 %v947, %v953
        %v957 = vmul.f32 %v948, %v953
        %v958 = vld [vmem:[#allocation12 + $0x8] sm:$0x1]
        %v959 = vlaneseq
        %v960 = vshrl.u32 %v959, 7
        %v961 = vsub.s32 0, %v960
        %v962 = vrot.slane %v958, %v961
        %v963 = vadd.f32 %v954, %v962
        %v964 = vadd.f32 %v955, %v962
        %v965 = vadd.f32 %v956, %v962
        %v966 = vadd.f32 %v957, %v962
        %v967 = vpack.c.bf16 %v964, %v963
        %v968 = vpack.c.bf16 %v966, %v965
        %v969 = vld [vmem:[#allocation11] sm:$0xf]
        %v970 = vld [vmem:[#allocation11 + $0x4] sm:$0xf]
        %v971 = vld [vmem:[#allocation11 + $0x8] sm:$0xf]
        %v972 = vld [vmem:[#allocation11 + $0xc] sm:$0xf]
        %v973 = vld [vmem:[#allocation11 + $0x10] sm:$0xf]
        %v974 = vld [vmem:[#allocation11 + $0x14] sm:$0xf]
        %v975 = vld [vmem:[#allocation11 + $0x18] sm:$0xf]
        %v976 = vld [vmem:[#allocation11 + $0x1c] sm:$0xf]
        %v977 = vld [vmem:[#allocation11 + $0x20] sm:$0xf]
        %v978 = vld [vmem:[#allocation11 + $0x24] sm:$0xf]
        %v979 = vld [vmem:[#allocation11 + $0x28] sm:$0xf]
        %v980 = vld [vmem:[#allocation11 + $0x2c] sm:$0xf]
        %v981 = vld [vmem:[#allocation11 + $0x30] sm:$0xf]
        %v982 = vld [vmem:[#allocation11 + $0x34] sm:$0xf]
        %v983 = vld [vmem:[#allocation11 + $0x38] sm:$0xf]
        %v984 = vld [vmem:[#allocation11 + $0x3c] sm:$0xf]
        %v985 = vld [vmem:[#allocation12 + $0x9] sm:$0x1]
        %v986 = vlaneseq
        %v987 = vshrl.u32 %v986, 7
        %v988 = vsub.s32 0, %v987
        %v989 = vrot.slane %v985, %v988
        %v1006 = vunpack.c.l.b16 %v969
        %v1007 = vunpack.c.l.b16 %v970
        %v1008 = vunpack.c.l.b16 %v971
        %v1009 = vunpack.c.l.b16 %v972
        %v1010 = vunpack.c.l.b16 %v973
        %v1011 = vunpack.c.l.b16 %v974
        %v1012 = vunpack.c.l.b16 %v975
        %v1013 = vunpack.c.l.b16 %v976
        %v1014 = vunpack.c.l.b16 %v977
        %v1015 = vunpack.c.l.b16 %v978
        %v1016 = vunpack.c.l.b16 %v979
        %v1017 = vunpack.c.l.b16 %v980
        %v1018 = vunpack.c.l.b16 %v981
        %v1019 = vunpack.c.l.b16 %v982
        %v1020 = vunpack.c.l.b16 %v983
        %v1021 = vunpack.c.l.b16 %v984
        %v1022 = vpack.c.b16 %v1007, %v1006
        %v1023 = vpack.c.b16 %v1009, %v1008
        %v1024 = vpack.c.b16 %v1011, %v1010
        %v1025 = vpack.c.b16 %v1013, %v1012
        %v1026 = vpack.c.b16 %v1015, %v1014
        %v1027 = vpack.c.b16 %v1017, %v1016
        %v1028 = vpack.c.b16 %v1019, %v1018
        %v1029 = vpack.c.b16 %v1021, %v1020
        %1038 = vmatprep.subr.bf16.mxu0 0
        %1039 = vmatpush1.bf16.msra.mxu0 %v1029
        %1040 = vmatprep.subr.bf16.mxu0 0
        %1041 = vmatpush1.bf16.msra.mxu0 %v1028
        %1042 = vmatprep.subr.bf16.mxu0 0
        %1043 = vmatpush1.bf16.msra.mxu0 %v1027
        %1044 = vmatprep.subr.bf16.mxu0 0
        %1045 = vmatpush1.bf16.msra.mxu0 %v1026
        %1046 = vmatprep.subr.bf16.mxu0 0
        %1047 = vmatpush1.bf16.msra.mxu0 %v1025
        %1048 = vmatprep.subr.bf16.mxu0 0
        %1049 = vmatpush1.bf16.msra.mxu0 %v1024
        %1050 = vmatprep.subr.bf16.mxu0 0
        %1051 = vmatpush1.bf16.msra.mxu0 %v1023
        %1052 = vmatprep.subr.bf16.mxu0 0
        %1053 = vmatpush1.bf16.msra.mxu0 %v1022
        %1054 = vmatprep.subr.bf16.mxu0 0
        %1055 = vmatpush2.bf16.msra.mxu0 0
        %1056 = vmatprep.subr.bf16.mxu0 0
        %1057 = vmatpush2.bf16.msra.mxu0 0
        %1058 = vmatprep.subr.bf16.mxu0 0
        %1059 = vmatpush2.bf16.msra.mxu0 0
        %1060 = vmatprep.subr.bf16.mxu0 0
        %1061 = vmatpush2.bf16.msra.mxu0 0
        %1062 = vmatprep.subr.bf16.mxu0 0
        %1063 = vmatpush2.bf16.msra.mxu0 0
        %1064 = vmatprep.subr.bf16.mxu0 0
        %1065 = vmatpush2.bf16.msra.mxu0 0
        %1066 = vmatprep.subr.bf16.mxu0 0
        %1067 = vmatpush2.bf16.msra.mxu0 0
        %1068 = vmatprep.subr.bf16.mxu0 0
        %1069 = vmatpush2.bf16.msra.mxu0 0
        %1070 = vmatprep.mubr.bf16.mxu0 0
        %1071 = vmatmul.mubr.bf16.gmra.mxu0 %v967
        %v1072 = vpop.f32.mrf.mxu0
        %v1073 = vadd.f32 %v989, %v1072
        %v1074 = vpop.f32.mrf.mxu0
        %v1075 = vpop.f32.mrf.mxu0
        %v1076 = vadd.f32 %v989, %v1075
        %v1077 = vpop.f32.mrf.mxu0
        %1078 = vmatprep.mubr.bf16.mxu0 0
        %1079 = vmatmul.mubr.bf16.gmra.mxu0 %v968
        %v1080 = vpop.f32.mrf.mxu0
        %v1081 = vadd.f32 %v989, %v1080
        %v1082 = vpop.f32.mrf.mxu0
        %v1083 = vpop.f32.mrf.mxu0
        %v1084 = vadd.f32 %v989, %v1083
        %v1085 = vpop.f32.mrf.mxu0
        %1086 = vdwg.mxu0
        %v1087 = vtanh.pop %v1073
        %v1088 = vtanh.pop %v1076
        %v1089 = vtanh.pop %v1081
        %v1090 = vtanh.pop %v1084
        %v1091 = vstv %s374
        %v1092 = vmul.f32 %v1087, %v1091
        %v1093 = vmul.f32 %v1088, %v1091
        %v1094 = vmul.f32 %v1089, %v1091
        %v1095 = vmul.f32 %v1090, %v1091
        %1096 = vst [vmem:[%s370] sm:$0xff] %v1092
        %1097 = vst [vmem:[%s370 + $0x8] sm:$0xff] %v1093
        %1098 = vst [vmem:[%s370 + $0x10] sm:$0xff] %v1094
        %1099 = vst [vmem:[%s370 + $0x18] sm:$0xff] %v1095
        %s1100 = sand.u32 %s188, 1
        %s1101 = scalar_lea.sflag [#allocation5], %s1100
        %s1102 = sand.u32 %s188, 1
        %s1103 = smul.addr %s1102, 32
        %s1104 = scalar_lea.vmem [#allocation14], %s1103
        // Predicated region
        $region73: #{tpu_custom_call.1} parent=47 // pred_check
          %p1105 = pneg %p198
        $region74: #{tpu_custom_call.1} parent=47 // pred_check_branch
          %1107 = sbr.rel (%p1105) target = $region76
        $region75: #{tpu_custom_call.1} parent=47 // pred_region
          %s1108 = smul.u32 4, %s28
          %s1110 = ssub.s32 512, 512
          %1111 = vsyncadd %s1101, %s1110
          %s1112 = smul.addr %s1108, 128
          %s1113 = scalar_lea.hbm %s7, %s1112
          %s1114 = sshll.u32 %s1104, 4
          %s1115 = int_to_ptr.vmem [resolvable:$true] %s1114
          %1120 = dma.vmem_to_hbm [thread:$0]  %s1115, 512, %s1113, %s1101, 128, 128, 8
        $region76: #{tpu_custom_call.1} parent=47 // pred_fallthru
          _
      $region48: #{tpu_custom_call.1} parent=5 // pred_fallthru
        _
      %p1121 = scmp.le.s32.totalorder 2, %s23
      // Predicated region
      $region77: #{tpu_custom_call.1} parent=5 // pred_check
        %p1122 = pneg %p1121
      $region78: #{tpu_custom_call.1} parent=5 // pred_check_branch
        %1124 = sbr.rel (%p1122) target = $region80
      $region79: #{tpu_custom_call.1} parent=5 // pred_region
        %s1125 = ssub.s32 %s23, 2
        // Predicated region
        $region81: #{tpu_custom_call.1} parent=79 // pred_check
          %p1126 = pneg %p204
        $region82: #{tpu_custom_call.1} parent=79 // pred_check_branch
          %1128 = sbr.rel (%p1126) target = $region84
        $region83: #{tpu_custom_call.1} parent=79 // pred_region
          %s1129 = sand.u32 %s189, 1
          %s1130 = scalar_lea.sflag [#allocation5], %s1129
          %s1131 = sand.u32 %s189, 1
          %s1132 = smul.addr %s1131, 32
          %s1133 = scalar_lea.vmem [#allocation14], %s1132
          %1134 = dma.done %s1130, 512
        $region84: #{tpu_custom_call.1} parent=79 // pred_fallthru
          _
      $region80: #{tpu_custom_call.1} parent=5 // pred_fallthru
        _
    $region6: #{tpu_custom_call.1} parent=1 // loop_footer
      %s27 = sadd.s32 1, %s23
    $region7: #{tpu_custom_call.1} parent=1 // loop_footer_branch
      %22 = sbr.rel target = $region3
    $region8: #{tpu_custom_call.1} parent=1 // loop_exit
      _
    %1135 = vsyncpa [#allocation4], 1
    %s1136 = scalar_lea.sflag [#allocation4], 1
    %1137 = vsyncpa %s1136, 1
    %1138 = vsyncpa [#allocation7], 1
    %1139 = vsyncpa [#allocation10], 1
    %1140 = vsyncpa [#allocation13], 1
    %1141 = vsyncpa [#allocation5], 1
    %s1142 = scalar_lea.sflag [#allocation5], 1
    %1143 = vsyncpa %s1142, 1

</llo_original>
